<compile_context>
chip_gen: v7x
topology: tpu7x:2x2x1
jax: 0.10.0
libtpu: 0.0.40
codegen_flags: <defaults>
</compile_context>

<pallas_src>
import functools

import jax
import jax.numpy as jnp
from jax import lax
from jax.experimental import pallas as pl
from jax.experimental.pallas import tpu as pltpu

_HIGHEST = jax.lax.Precision.HIGHEST


# --------------------------------------------------------------------------
# VMEM budgeting / tiling helpers
# --------------------------------------------------------------------------
def _vmem_limit_bytes():
    """Per-generation VMEM limit: ~3/4 of physical, capped at 96 MiB."""
    try:
        cap = int(pltpu.get_tpu_info().vmem_capacity_bytes)
    except Exception:
        return 48 * 1024 * 1024          # conservative: safe even on v7x (64 MiB)
    return int(min(cap * 3 // 4, 96 * 1024 * 1024))


def _pick_tile_p(hw_out, per_col_bytes, vmem_budget_bytes):
    """Lane-dense tile along the flattened (padded) output axis.

    Picks the largest of {512, 256} that (a) still yields >= 2 p-tiles (so the
    p axis can shard across TensorCores) and (b) fits the VMEM budget for the
    tile-proportional temporaries; otherwise falls back to 128.  Returns
    (tile_p, hw_padded) with hw_padded a multiple of tile_p.
    """
    hw_pad = pl.cdiv(hw_out, 128) * 128
    if hw_pad <= 128:
        return hw_pad, hw_pad
    tile = 128
    for t in (512, 256):
        if hw_pad >= 2 * t and t * per_col_bytes <= vmem_budget_bytes:
            tile = t
            break
    hw_pad = pl.cdiv(hw_pad, tile) * tile
    return tile, hw_pad


# --------------------------------------------------------------------------
# In-kernel helpers
# --------------------------------------------------------------------------
def _out_positions(w_out, tile_p):
    """(row, col) of the flat output positions handled by this grid step."""
    p0 = pl.program_id(1) * tile_p
    pos = (p0 + lax.broadcasted_iota(jnp.int32, (1, tile_p), 1)).astype(jnp.float32)
    row = jnp.floor(pos / w_out)
    col = pos - row * w_out
    return row, col


def _round_half_even(x):
    """Round-half-to-even (matches torch grid_sample's std::nearbyint)."""
    r = jnp.floor(x + 0.5)
    tie = (x + 0.5) == r
    odd = (r * 0.5) != jnp.floor(r * 0.5)
    return jnp.where(tie & odd, r - 1.0, r)


def _axis_weights(coord, n_in, tile_p, mode):
    """w[q, p] = interpolation weight of source index q (one axis) for output p.

    padding_mode='zeros' is automatic: out-of-range corners have no matching
    in-range q, so their weight simply never appears.
    """
    idx = lax.broadcasted_iota(jnp.int32, (n_in, tile_p), 0).astype(jnp.float32)
    if mode == 'bilinear':
        return jnp.maximum(1.0 - jnp.abs(coord - idx), 0.0)
    # nearest
    nearest = _round_half_even(coord)
    return jnp.where(idx == nearest, 1.0, 0.0)


def _separable_sample(img, wy, wx, precision=None):
    """Sample one channel: img (H, W), wy (H, P), wx (W, P) -> (1, P).

    Stage 1 (MXU): contract over x.  Stage 2 (VPU/XLU): weight by wy, reduce y.
    """
    t = jnp.dot(img, wx, precision=precision,
                preferred_element_type=jnp.float32)        # (H, P)
    return jnp.sum(t * wy, axis=0, keepdims=True)          # (1, P)


def _sample_all_channels(src_ref, wy, wx, precision=None):
    c = src_ref.shape[1]
    return [_separable_sample(src_ref[0, ch], wy, wx, precision=precision)
            for ch in range(c)]


def _stack_channels(chans, tile_p):
    """Assemble a list of (1, P) rows into one (C, P) block for a single store."""
    c = len(chans)
    if c == 1:
        return chans[0]
    ridx = lax.broadcasted_iota(jnp.int32, (c, tile_p), 0)
    out = jnp.broadcast_to(chans[0], (c, tile_p))
    for r in range(1, c):
        out = jnp.where(ridx == r, chans[r], out)
    return out


# --------------------------------------------------------------------------
# Kernels
# --------------------------------------------------------------------------
def _stn_kernel(src_ref, disp_ref, out_ref, *, mode, islabel,
                h_src, w_src, h_flow, w_flow, tile_p):
    row, col = _out_positions(w_flow, tile_p)
    disp = disp_ref[0]                       # (2, tile_p)
    fy = disp[0:1, :]
    fx = disp[1:2, :]
    # Folded normalise (/(shape-1)) + grid_sample unnormalise (align_corners=False).
    iy = (row + fy) * (h_src / (h_flow - 1.0)) - 0.5
    ix = (col + fx) * (w_src / (w_flow - 1.0)) - 0.5
    wy = _axis_weights(iy, h_src, tile_p, mode)
    wx = _axis_weights(ix, w_src, tile_p, mode)
    chans = _sample_all_channels(src_ref, wy, wx)
    if islabel:
        chans[0] = 1.0 - chans[1]            # output[:, 0] = 1 - output[:, 1]
    out_ref[0] = _stack_channels(chans, tile_p).astype(out_ref.dtype)


def _re_stn_kernel(flow_src_ref, disp_ref, src_ref, out_ref, *, mode, islabel,
                   h_src, w_src, h_flow, w_flow, tile_p):
    row, col = _out_positions(w_flow, tile_p)
    disp = disp_ref[0]                       # (2, tile_p)
    fy = disp[0:1, :]
    fx = disp[1:2, :]

    # ---- pass 1: warped = stn(flow, flow, 'bilinear')  (islabel forces nearest) ----
    mode1 = 'nearest' if islabel else 'bilinear'
    iy1 = (row + fy) * (h_flow / (h_flow - 1.0)) - 0.5
    ix1 = (col + fx) * (w_flow / (w_flow - 1.0)) - 0.5
    wy1 = _axis_weights(iy1, h_flow, tile_p, mode1)
    wx1 = _axis_weights(ix1, w_flow, tile_p, mode1)
    # Pass-1 result feeds index selection in pass 2 -> full f32 accuracy on MXU.
    warp_y = _separable_sample(flow_src_ref[0, 0], wy1, wx1, precision=_HIGHEST)
    warp_x = _separable_sample(flow_src_ref[0, 1], wy1, wx1, precision=_HIGHEST)
    if islabel:
        # Reference: the inner stn also applies output[:,0] = 1 - output[:,1].
        warp_y = 1.0 - warp_x
    gy = -warp_y                             # fused: flow' = -1 * warped (stays in VMEM)
    gx = -warp_x

    # ---- pass 2: out = stn(src, flow', mode) ----
    iy2 = (row + gy) * (h_src / (h_flow - 1.0)) - 0.5
    ix2 = (col + gx) * (w_src / (w_flow - 1.0)) - 0.5
    wy2 = _axis_weights(iy2, h_src, tile_p, mode)
    wx2 = _axis_weights(ix2, w_src, tile_p, mode)
    chans = _sample_all_channels(src_ref, wy2, wx2)
    if islabel:
        chans[0] = 1.0 - chans[1]
    out_ref[0] = _stack_channels(chans, tile_p).astype(out_ref.dtype)


# --------------------------------------------------------------------------
# Wrappers
# --------------------------------------------------------------------------
def spatial_transformer_2d(src, flow, mode='bilinear', islabel=False):
    """SpatialTransformer_2d.forward (single warp)."""
    if islabel:
        mode = 'nearest'
    assert mode in ('bilinear', 'nearest')
    src = src.astype(jnp.float32)
    flow = flow.astype(jnp.float32)
    n, c, h_s, w_s = src.shape
    nf, two, h_f, w_f = flow.shape
    assert two == 2 and nf == n
    if islabel:
        assert c >= 2, "islabel path reads channel 1 of the output"

    hw_f = h_f * w_f
    vmem_limit = _vmem_limit_bytes()
    fixed = 4 * 2 * c * h_s * w_s                               # double-buffered src
    per_col = 4 * (h_s + w_s + 3 * h_s + 2 * (2 + c) + 16)      # tile-proportional temps
    budget = max(0, (vmem_limit - fixed) // 2)
    tile_p, hw_pad = _pick_tile_p(hw_f, per_col, budget)

    flow_flat = flow.reshape(n, 2, hw_f)
    if hw_pad != hw_f:
        flow_flat = jnp.pad(flow_flat, ((0, 0), (0, 0), (0, hw_pad - hw_f)))

    kernel = functools.partial(_stn_kernel, mode=mode, islabel=islabel,
                               h_src=h_s, w_src=w_s, h_flow=h_f, w_flow=w_f,
                               tile_p=tile_p)
    out_flat = pl.pallas_call(
        kernel,
        out_shape=jax.ShapeDtypeStruct((n, c, hw_pad), jnp.float32),
        grid=(n, hw_pad // tile_p),
        in_specs=[
            pl.BlockSpec((1, c, h_s, w_s), lambda i, p: (i, 0, 0, 0)),  # gather source
            pl.BlockSpec((1, 2, tile_p), lambda i, p: (i, 0, p)),       # displacement tile
        ],
        out_specs=pl.BlockSpec((1, c, tile_p), lambda i, p: (i, 0, p)),
        compiler_params=pltpu.CompilerParams(
            dimension_semantics=("parallel", "parallel"),
            vmem_limit_bytes=vmem_limit),
    )(src, flow_flat)
    return out_flat[:, :, :hw_f].reshape(n, c, h_f, w_f)


def re_spatial_transformer_2d(src, flow, mode='bilinear', islabel=False):
    """Re_SpatialTransformer_2d.forward, both STN passes fused in one kernel:
       flow' = -1 * stn(flow, flow, 'bilinear'); return stn(src, flow', mode)."""
    if islabel:
        mode = 'nearest'
    assert mode in ('bilinear', 'nearest')
    src = src.astype(jnp.float32)
    flow = flow.astype(jnp.float32)
    n, c, h_s, w_s = src.shape
    nf, two, h_f, w_f = flow.shape
    assert two == 2 and nf == n
    if islabel:
        assert c >= 2, "islabel path reads channel 1 of the output"

    hw_f = h_f * w_f
    vmem_limit = _vmem_limit_bytes()
    fixed = 4 * 2 * (c * h_s * w_s + 2 * h_f * w_f)             # double-buffered gather sources
    per_col = 4 * (h_f + w_f + h_s + w_s + 3 * max(h_f, h_s) + 2 * (2 + c) + 16)
    budget = max(0, (vmem_limit - fixed) // 2)
    tile_p, hw_pad = _pick_tile_p(hw_f, per_col, budget)

    flow_flat = flow.reshape(n, 2, hw_f)
    if hw_pad != hw_f:
        flow_flat = jnp.pad(flow_flat, ((0, 0), (0, 0), (0, hw_pad - hw_f)))

    kernel = functools.partial(_re_stn_kernel, mode=mode, islabel=islabel,
                               h_src=h_s, w_src=w_s, h_flow=h_f, w_flow=w_f,
                               tile_p=tile_p)
    out_flat = pl.pallas_call(
        kernel,
        out_shape=jax.ShapeDtypeStruct((n, c, hw_pad), jnp.float32),
        grid=(n, hw_pad // tile_p),
        in_specs=[
            pl.BlockSpec((1, 2, h_f, w_f), lambda i, p: (i, 0, 0, 0)),  # pass-1 gather source
            pl.BlockSpec((1, 2, tile_p), lambda i, p: (i, 0, p)),       # displacement tile
            pl.BlockSpec((1, c, h_s, w_s), lambda i, p: (i, 0, 0, 0)),  # pass-2 gather source
        ],
        out_specs=pl.BlockSpec((1, c, tile_p), lambda i, p: (i, 0, p)),
        compiler_params=pltpu.CompilerParams(
            dimension_semantics=("parallel", "parallel"),
            vmem_limit_bytes=vmem_limit),
    )(flow, flow_flat, src)
    return out_flat[:, :, :hw_f].reshape(n, c, h_f, w_f)


if __name__ == "__main__":
    key = jax.random.PRNGKey(0)
    k1, k2 = jax.random.split(key)
    N, C, H, W = 2, 4, 16, 16
    src = jax.random.normal(k1, (N, C, H, W), dtype=jnp.float32)
    flow = 3.0 * jax.random.normal(k2, (N, 2, H, W), dtype=jnp.float32)

    out = re_spatial_transformer_2d(src, flow, mode='bilinear', islabel=False)
    out = jax.block_until_ready(out)
    assert out.shape == (N, C, H, W)
    assert bool(jnp.all(jnp.isfinite(out)))

    out_lbl = re_spatial_transformer_2d(src, flow, islabel=True)
    out_lbl = jax.block_until_ready(out_lbl)
    assert out_lbl.shape == (N, C, H, W)
    assert bool(jnp.all(jnp.isfinite(out_lbl)))

    print("KERNEL_OK")
</pallas_src>

<mosaic_0001>
module attributes {stable_mosaic.version = 11 : i64} {
  func.func @_re_stn_kernel(%arg0: i32, %arg1: i32, %arg2: memref<1x2x16x16xf32, #tpu.memory_space<vmem>>, %arg3: memref<1x2x128xf32, #tpu.memory_space<vmem>>, %arg4: memref<1x4x16x16xf32, #tpu.memory_space<vmem>>, %arg5: memref<1x4x128xf32, #tpu.memory_space<vmem>>) attributes {dimension_semantics = [#tpu.dimension_semantics<parallel>, #tpu.dimension_semantics<parallel>], iteration_bounds = array<i64: 2, 2>, scalar_prefetch = 0 : i64, scratch_operands = 0 : i64, tpu.core_type = #tpu.core_type<tc>, window_params = [{transform_indices = @transform_0, window_bounds = array<i64: 1, 2, 16, 16>}, {transform_indices = @transform_1, window_bounds = array<i64: 1, 2, 128>}, {transform_indices = @transform_2, window_bounds = array<i64: 1, 4, 16, 16>}, {transform_indices = @transform_3, window_bounds = array<i64: 1, 4, 128>}]} {
    %c128_i32 = arith.constant 128 : i32
    %0 = arith.muli %arg1, %c128_i32 : i32
    %1 = tpu.iota {dimensions = array<i32: 1>} : vector<1x128xi32>
    %2 = vector.broadcast %0 : i32 to vector<1x128xi32>
    %3 = arith.addi %2, %1 : vector<1x128xi32>
    %4 = arith.sitofp %3 : vector<1x128xi32> to vector<1x128xf32>
    %cst = arith.constant 1.600000e+01 : f32
    %5 = vector.broadcast %cst : f32 to vector<1x128xf32>
    %6 = arith.divf %4, %5 : vector<1x128xf32>
    %7 = math.floor %6 : vector<1x128xf32>
    %cst_0 = arith.constant 1.600000e+01 : f32
    %8 = vector.broadcast %cst_0 : f32 to vector<1x128xf32>
    %9 = arith.mulf %7, %8 : vector<1x128xf32>
    %10 = arith.subf %4, %9 : vector<1x128xf32>
    %c0 = arith.constant 0 : index
    %c0_1 = arith.constant 0 : index
    %c0_2 = arith.constant 0 : index
    %11 = vector.load %arg3[%c0, %c0_1, %c0_2] : memref<1x2x128xf32, #tpu.memory_space<vmem>>, vector<1x2x128xf32>
    %12 = vector.shape_cast %11 : vector<1x2x128xf32> to vector<2x128xf32>
    %13 = vector.extract_strided_slice %12 {offsets = [0, 0], sizes = [1, 128], strides = [1, 1]} : vector<2x128xf32> to vector<1x128xf32>
    %14 = vector.extract_strided_slice %12 {offsets = [1, 0], sizes = [1, 128], strides = [1, 1]} : vector<2x128xf32> to vector<1x128xf32>
    %15 = arith.addf %7, %13 : vector<1x128xf32>
    %cst_3 = arith.constant 1.06666672 : f32
    %16 = vector.broadcast %cst_3 : f32 to vector<1x128xf32>
    %17 = arith.mulf %15, %16 : vector<1x128xf32>
    %cst_4 = arith.constant 5.000000e-01 : f32
    %18 = vector.broadcast %cst_4 : f32 to vector<1x128xf32>
    %19 = arith.subf %17, %18 : vector<1x128xf32>
    %20 = arith.addf %10, %14 : vector<1x128xf32>
    %cst_5 = arith.constant 1.06666672 : f32
    %21 = vector.broadcast %cst_5 : f32 to vector<1x128xf32>
    %22 = arith.mulf %20, %21 : vector<1x128xf32>
    %cst_6 = arith.constant 5.000000e-01 : f32
    %23 = vector.broadcast %cst_6 : f32 to vector<1x128xf32>
    %24 = arith.subf %22, %23 : vector<1x128xf32>
    %25 = tpu.iota {dimensions = array<i32: 0>} : vector<16x128xi32>
    %26 = arith.sitofp %25 : vector<16x128xi32> to vector<16x128xf32>
    %27 = vector.broadcast %19 : vector<1x128xf32> to vector<16x128xf32>
    %28 = arith.subf %27, %26 : vector<16x128xf32>
    %29 = math.absf %28 : vector<16x128xf32>
    %cst_7 = arith.constant 1.000000e+00 : f32
    %30 = vector.broadcast %cst_7 : f32 to vector<16x128xf32>
    %31 = arith.subf %30, %29 : vector<16x128xf32>
    %cst_8 = arith.constant 0.000000e+00 : f32
    %32 = vector.broadcast %cst_8 : f32 to vector<16x128xf32>
    %33 = arith.maximumf %31, %32 : vector<16x128xf32>
    %34 = tpu.iota {dimensions = array<i32: 0>} : vector<16x128xi32>
    %35 = arith.sitofp %34 : vector<16x128xi32> to vector<16x128xf32>
    %36 = vector.broadcast %24 : vector<1x128xf32> to vector<16x128xf32>
    %37 = arith.subf %36, %35 : vector<16x128xf32>
    %38 = math.absf %37 : vector<16x128xf32>
    %cst_9 = arith.constant 1.000000e+00 : f32
    %39 = vector.broadcast %cst_9 : f32 to vector<16x128xf32>
    %40 = arith.subf %39, %38 : vector<16x128xf32>
    %cst_10 = arith.constant 0.000000e+00 : f32
    %41 = vector.broadcast %cst_10 : f32 to vector<16x128xf32>
    %42 = arith.maximumf %40, %41 : vector<16x128xf32>
    %c0_11 = arith.constant 0 : index
    %c0_12 = arith.constant 0 : index
    %c0_13 = arith.constant 0 : index
    %c0_14 = arith.constant 0 : index
    %43 = vector.load %arg2[%c0_11, %c0_12, %c0_13, %c0_14] : memref<1x2x16x16xf32, #tpu.memory_space<vmem>>, vector<1x1x16x16xf32>
    %44 = vector.shape_cast %43 : vector<1x1x16x16xf32> to vector<16x16xf32>
    %cst_15 = arith.constant dense<0.000000e+00> : vector<16x128xf32>
    %45 = tpu.matmul %44, %42, %cst_15 {dimension_numbers = #tpu.dot_dimension_numbers<[1], [0], [0], [1], [0, 0, 1, 1], [], []>, precision = #tpu.contract_precision<fp32>} : vector<16x16xf32>, vector<16x128xf32>, vector<16x128xf32> -> vector<16x128xf32>
    %46 = arith.mulf %45, %33 : vector<16x128xf32>
    %cst_16 = arith.constant dense<0.000000e+00> : vector<128xf32>
    %47 = vector.multi_reduction <add>, %46, %cst_16 [0] : vector<16x128xf32> to vector<128xf32>
    %48 = vector.shape_cast %47 : vector<128xf32> to vector<1x128xf32>
    %c0_17 = arith.constant 0 : index
    %c1 = arith.constant 1 : index
    %c0_18 = arith.constant 0 : index
    %c0_19 = arith.constant 0 : index
    %49 = vector.load %arg2[%c0_17, %c1, %c0_18, %c0_19] : memref<1x2x16x16xf32, #tpu.memory_space<vmem>>, vector<1x1x16x16xf32>
    %50 = vector.shape_cast %49 : vector<1x1x16x16xf32> to vector<16x16xf32>
    %cst_20 = arith.constant dense<0.000000e+00> : vector<16x128xf32>
    %51 = tpu.matmul %50, %42, %cst_20 {dimension_numbers = #tpu.dot_dimension_numbers<[1], [0], [0], [1], [0, 0, 1, 1], [], []>, precision = #tpu.contract_precision<fp32>} : vector<16x16xf32>, vector<16x128xf32>, vector<16x128xf32> -> vector<16x128xf32>
    %52 = arith.mulf %51, %33 : vector<16x128xf32>
    %cst_21 = arith.constant dense<0.000000e+00> : vector<128xf32>
    %53 = vector.multi_reduction <add>, %52, %cst_21 [0] : vector<16x128xf32> to vector<128xf32>
    %54 = vector.shape_cast %53 : vector<128xf32> to vector<1x128xf32>
    %cst_22 = arith.constant 0.000000e+00 : f32
    %55 = vector.broadcast %cst_22 : f32 to vector<1x128xf32>
    %56 = arith.subf %55, %48 : vector<1x128xf32>
    %cst_23 = arith.constant 0.000000e+00 : f32
    %57 = vector.broadcast %cst_23 : f32 to vector<1x128xf32>
    %58 = arith.subf %57, %54 : vector<1x128xf32>
    %59 = arith.addf %7, %56 : vector<1x128xf32>
    %cst_24 = arith.constant 1.06666672 : f32
    %60 = vector.broadcast %cst_24 : f32 to vector<1x128xf32>
    %61 = arith.mulf %59, %60 : vector<1x128xf32>
    %cst_25 = arith.constant 5.000000e-01 : f32
    %62 = vector.broadcast %cst_25 : f32 to vector<1x128xf32>
    %63 = arith.subf %61, %62 : vector<1x128xf32>
    %64 = arith.addf %10, %58 : vector<1x128xf32>
    %cst_26 = arith.constant 1.06666672 : f32
    %65 = vector.broadcast %cst_26 : f32 to vector<1x128xf32>
    %66 = arith.mulf %64, %65 : vector<1x128xf32>
    %cst_27 = arith.constant 5.000000e-01 : f32
    %67 = vector.broadcast %cst_27 : f32 to vector<1x128xf32>
    %68 = arith.subf %66, %67 : vector<1x128xf32>
    %69 = tpu.iota {dimensions = array<i32: 0>} : vector<16x128xi32>
    %70 = arith.sitofp %69 : vector<16x128xi32> to vector<16x128xf32>
    %71 = vector.broadcast %63 : vector<1x128xf32> to vector<16x128xf32>
    %72 = arith.subf %71, %70 : vector<16x128xf32>
    %73 = math.absf %72 : vector<16x128xf32>
    %cst_28 = arith.constant 1.000000e+00 : f32
    %74 = vector.broadcast %cst_28 : f32 to vector<16x128xf32>
    %75 = arith.subf %74, %73 : vector<16x128xf32>
    %cst_29 = arith.constant 0.000000e+00 : f32
    %76 = vector.broadcast %cst_29 : f32 to vector<16x128xf32>
    %77 = arith.maximumf %75, %76 : vector<16x128xf32>
    %78 = tpu.iota {dimensions = array<i32: 0>} : vector<16x128xi32>
    %79 = arith.sitofp %78 : vector<16x128xi32> to vector<16x128xf32>
    %80 = vector.broadcast %68 : vector<1x128xf32> to vector<16x128xf32>
    %81 = arith.subf %80, %79 : vector<16x128xf32>
    %82 = math.absf %81 : vector<16x128xf32>
    %cst_30 = arith.constant 1.000000e+00 : f32
    %83 = vector.broadcast %cst_30 : f32 to vector<16x128xf32>
    %84 = arith.subf %83, %82 : vector<16x128xf32>
    %cst_31 = arith.constant 0.000000e+00 : f32
    %85 = vector.broadcast %cst_31 : f32 to vector<16x128xf32>
    %86 = arith.maximumf %84, %85 : vector<16x128xf32>
    %c0_32 = arith.constant 0 : index
    %c0_33 = arith.constant 0 : index
    %c0_34 = arith.constant 0 : index
    %c0_35 = arith.constant 0 : index
    %87 = vector.load %arg4[%c0_32, %c0_33, %c0_34, %c0_35] : memref<1x4x16x16xf32, #tpu.memory_space<vmem>>, vector<1x1x16x16xf32>
    %88 = vector.shape_cast %87 : vector<1x1x16x16xf32> to vector<16x16xf32>
    %cst_36 = arith.constant dense<0.000000e+00> : vector<16x128xf32>
    %89 = tpu.matmul %88, %86, %cst_36 {dimension_numbers = #tpu.dot_dimension_numbers<[1], [0], [0], [1], [0, 0, 1, 1], [], []>} : vector<16x16xf32>, vector<16x128xf32>, vector<16x128xf32> -> vector<16x128xf32>
    %90 = arith.mulf %89, %77 : vector<16x128xf32>
    %cst_37 = arith.constant dense<0.000000e+00> : vector<128xf32>
    %91 = vector.multi_reduction <add>, %90, %cst_37 [0] : vector<16x128xf32> to vector<128xf32>
    %92 = vector.shape_cast %91 : vector<128xf32> to vector<1x128xf32>
    %c0_38 = arith.constant 0 : index
    %c1_39 = arith.constant 1 : index
    %c0_40 = arith.constant 0 : index
    %c0_41 = arith.constant 0 : index
    %93 = vector.load %arg4[%c0_38, %c1_39, %c0_40, %c0_41] : memref<1x4x16x16xf32, #tpu.memory_space<vmem>>, vector<1x1x16x16xf32>
    %94 = vector.shape_cast %93 : vector<1x1x16x16xf32> to vector<16x16xf32>
    %cst_42 = arith.constant dense<0.000000e+00> : vector<16x128xf32>
    %95 = tpu.matmul %94, %86, %cst_42 {dimension_numbers = #tpu.dot_dimension_numbers<[1], [0], [0], [1], [0, 0, 1, 1], [], []>} : vector<16x16xf32>, vector<16x128xf32>, vector<16x128xf32> -> vector<16x128xf32>
    %96 = arith.mulf %95, %77 : vector<16x128xf32>
    %cst_43 = arith.constant dense<0.000000e+00> : vector<128xf32>
    %97 = vector.multi_reduction <add>, %96, %cst_43 [0] : vector<16x128xf32> to vector<128xf32>
    %98 = vector.shape_cast %97 : vector<128xf32> to vector<1x128xf32>
    %c0_44 = arith.constant 0 : index
    %c2 = arith.constant 2 : index
    %c0_45 = arith.constant 0 : index
    %c0_46 = arith.constant 0 : index
    %99 = vector.load %arg4[%c0_44, %c2, %c0_45, %c0_46] : memref<1x4x16x16xf32, #tpu.memory_space<vmem>>, vector<1x1x16x16xf32>
    %100 = vector.shape_cast %99 : vector<1x1x16x16xf32> to vector<16x16xf32>
    %cst_47 = arith.constant dense<0.000000e+00> : vector<16x128xf32>
    %101 = tpu.matmul %100, %86, %cst_47 {dimension_numbers = #tpu.dot_dimension_numbers<[1], [0], [0], [1], [0, 0, 1, 1], [], []>} : vector<16x16xf32>, vector<16x128xf32>, vector<16x128xf32> -> vector<16x128xf32>
    %102 = arith.mulf %101, %77 : vector<16x128xf32>
    %cst_48 = arith.constant dense<0.000000e+00> : vector<128xf32>
    %103 = vector.multi_reduction <add>, %102, %cst_48 [0] : vector<16x128xf32> to vector<128xf32>
    %104 = vector.shape_cast %103 : vector<128xf32> to vector<1x128xf32>
    %c0_49 = arith.constant 0 : index
    %c3 = arith.constant 3 : index
    %c0_50 = arith.constant 0 : index
    %c0_51 = arith.constant 0 : index
    %105 = vector.load %arg4[%c0_49, %c3, %c0_50, %c0_51] : memref<1x4x16x16xf32, #tpu.memory_space<vmem>>, vector<1x1x16x16xf32>
    %106 = vector.shape_cast %105 : vector<1x1x16x16xf32> to vector<16x16xf32>
    %cst_52 = arith.constant dense<0.000000e+00> : vector<16x128xf32>
    %107 = tpu.matmul %106, %86, %cst_52 {dimension_numbers = #tpu.dot_dimension_numbers<[1], [0], [0], [1], [0, 0, 1, 1], [], []>} : vector<16x16xf32>, vector<16x128xf32>, vector<16x128xf32> -> vector<16x128xf32>
    %108 = arith.mulf %107, %77 : vector<16x128xf32>
    %cst_53 = arith.constant dense<0.000000e+00> : vector<128xf32>
    %109 = vector.multi_reduction <add>, %108, %cst_53 [0] : vector<16x128xf32> to vector<128xf32>
    %110 = vector.shape_cast %109 : vector<128xf32> to vector<1x128xf32>
    %111 = tpu.iota {dimensions = array<i32: 0>} : vector<4x128xi32>
    %112 = vector.shape_cast %92 : vector<1x128xf32> to vector<1x128xf32>
    %113 = vector.broadcast %112 : vector<1x128xf32> to vector<4x128xf32>
    %c1_i32 = arith.constant 1 : i32
    %114 = vector.broadcast %c1_i32 : i32 to vector<4x128xi32>
    %115 = arith.cmpi eq, %111, %114 : vector<4x128xi32>
    %116 = vector.shape_cast %98 : vector<1x128xf32> to vector<1x128xf32>
    %117 = vector.broadcast %116 : vector<1x128xf32> to vector<4x128xf32>
    %118 = arith.select %115, %117, %113 : vector<4x128xi1>, vector<4x128xf32>
    %c2_i32 = arith.constant 2 : i32
    %119 = vector.broadcast %c2_i32 : i32 to vector<4x128xi32>
    %120 = arith.cmpi eq, %111, %119 : vector<4x128xi32>
    %121 = vector.shape_cast %104 : vector<1x128xf32> to vector<1x128xf32>
    %122 = vector.broadcast %121 : vector<1x128xf32> to vector<4x128xf32>
    %123 = arith.select %120, %122, %118 : vector<4x128xi1>, vector<4x128xf32>
    %c3_i32 = arith.constant 3 : i32
    %124 = vector.broadcast %c3_i32 : i32 to vector<4x128xi32>
    %125 = arith.cmpi eq, %111, %124 : vector<4x128xi32>
    %126 = vector.shape_cast %110 : vector<1x128xf32> to vector<1x128xf32>
    %127 = vector.broadcast %126 : vector<1x128xf32> to vector<4x128xf32>
    %128 = arith.select %125, %127, %123 : vector<4x128xi1>, vector<4x128xf32>
    %c0_54 = arith.constant 0 : index
    %c0_55 = arith.constant 0 : index
    %c0_56 = arith.constant 0 : index
    %129 = vector.load %arg5[%c0_54, %c0_55, %c0_56] : memref<1x4x128xf32, #tpu.memory_space<vmem>>, vector<1x4x128xf32>
    %130 = vector.shape_cast %129 : vector<1x4x128xf32> to vector<4x128xf32>
    %131 = vector.shape_cast %128 : vector<4x128xf32> to vector<1x4x128xf32>
    tpu.vector_store %arg5[%c0_54, %c0_55, %c0_56], %131 {strides = array<i32>} : memref<1x4x128xf32, #tpu.memory_space<vmem>>, vector<1x4x128xf32>,
    return
  }
  func.func @transform_0(%arg0: i32, %arg1: i32) -> (i32, i32, i32, i32) {
    %c0_i32 = arith.constant 0 : i32
    %c0_i32_0 = arith.constant 0 : i32
    %c0_i32_1 = arith.constant 0 : i32
    %c0_i32_2 = arith.constant 0 : i32
    return %arg0, %c0_i32, %c0_i32_0, %c0_i32_1 : i32, i32, i32, i32
  }
  func.func @transform_1(%arg0: i32, %arg1: i32) -> (i32, i32, i32) {
    %c0_i32 = arith.constant 0 : i32
    %c0_i32_0 = arith.constant 0 : i32
    return %arg0, %c0_i32, %arg1 : i32, i32, i32
  }
  func.func @transform_2(%arg0: i32, %arg1: i32) -> (i32, i32, i32, i32) {
    %c0_i32 = arith.constant 0 : i32
    %c0_i32_0 = arith.constant 0 : i32
    %c0_i32_1 = arith.constant 0 : i32
    %c0_i32_2 = arith.constant 0 : i32
    return %arg0, %c0_i32, %c0_i32_0, %c0_i32_1 : i32, i32, i32, i32
  }
  func.func @transform_3(%arg0: i32, %arg1: i32) -> (i32, i32, i32) {
    %c0_i32 = arith.constant 0 : i32
    %c0_i32_0 = arith.constant 0 : i32
    return %arg0, %c0_i32, %arg1 : i32, i32, i32
  }
}

</mosaic_0001>

<llo_original>
// kernel: tpu_custom_call.1
$region0: #{tpu_custom_call.1}
  #allocation0 [shape = 'u32[]', space=smem, size = 0x4, offset = 0x4, fixed_abs, tag = 'smem constant byte address 0x4 - core index']
  #allocation1 [shape = 'u32[144,128]{1,0:T(1,128)}', space=vmem, size = 0x12000, scoped, tag = 'internal scratch']
  %s0 = inlined_call_operand.hbm [shape: f32[2,2,16,16], index: 0, kind: input, shape index: {}]
  %s1 = inlined_call_operand.hbm [shape: f32[2,2,256], index: 1, kind: input, shape index: {}]
  %s2 = inlined_call_operand.hbm [shape: f32[2,4,16,16], index: 2, kind: input, shape index: {}]
  %s3 = inlined_call_operand.hbm [shape: f32[2,4,256], index: 3, kind: output, shape index: {}]
  %s4 = sld [smem:[#allocation0]]
  $region57: #{tpu_custom_call.1} parent=0
    _
  %s6 = ssub.s32 1, %s4
  %s7 = scalar_select 0, %s6, %s4
  $region1: #{tpu_custom_call.1} parent=0
    #allocation2 [shape = 'u8[32768]{0}', space=vmem, size = 0x8000, scoped, tag = 'input window, operand 0']
    #allocation3 [shape = 's32[2]{0}', space=sflag, size = 0x8, scoped, tag = 'scoped memory for tpu_custom_call.1']
    #allocation4 [shape = 's32[2]{0}', space=sflag, size = 0x8, scoped, tag = 'scoped memory for tpu_custom_call.1']
    #allocation5 [shape = 'u8[2048]{0}', space=vmem, size = 0x800, scoped, tag = 'input window, operand 1']
    #allocation6 [shape = 's32[2]{0}', space=sflag, size = 0x8, scoped, tag = 'scoped memory for tpu_custom_call.1']
    #allocation7 [shape = 'u8[65536]{0}', space=vmem, size = 0x10000, scoped, tag = 'input window, operand 2']
    #allocation8 [shape = 'u8[4096]{0}', space=vmem, size = 0x1000, scoped, tag = 'output window, operand 0']
    %8 = vsyncpa [#allocation3], 0
    %s9 = scalar_lea.sflag [#allocation3], 1
    %10 = vsyncpa %s9, 0
    %11 = vsyncpa [#allocation6], 0
    %s12 = scalar_lea.sflag [#allocation6], 1
    %13 = vsyncpa %s12, 0
    %14 = vsyncpa [#allocation4], 0
    %s15 = scalar_lea.sflag [#allocation4], 1
    %16 = vsyncpa %s15, 0
    loop: start=0, step=1, limit=6
    $region2: #{tpu_custom_call.1} parent=1 // loop_pre_header
      _
    $region3: #{tpu_custom_call.1} parent=1 // loop_header
      %s18 = sphi 0, %s22
      %p19 = scmp.ge.s32.totalorder %s18, 6
      %s25 = sphi 0, %s37
      %s26 = sphi 0, %s33
      %s27 = sphi 0, %s25
      %s28 = sphi 0, %s26
      %s29 = sphi 0, %s27
      %s30 = sphi 0, %s28
      %s40 = sphi 0, %s42
      %s43 = sphi 0, %s40
      %s44 = sphi 0, %s43
      %s60 = sphi 0, %s44
      %s68 = sphi 0, %s70
      %s71 = sphi 0, %s68
      %s72 = sphi 0, %s71
      %s88 = sphi 0, %s72
      %s94 = sphi 0, %s96
      %s97 = sphi 0, %s94
      %s98 = sphi 0, %s97
      %s114 = sphi 0, %s98
      %s122 = sphi 0, %s124
      %s125 = sphi 0, %s122
      %s126 = sphi 0, %s125
      %s142 = sphi 0, %s126
    $region4: #{tpu_custom_call.1} parent=1 // loop_header_branch
      %21 = sbr.rel (%p19) target = $region8
    $region5: #{tpu_custom_call.1} parent=1 // loop_body
      %s23 = ssub.s32 %s18, 1
      %s24 = ssub.s32 %s18, 2
      %s31 = sadd.s32 1, %s26
      %p32 = scmp.ge.s32.totalorder %s31, 2
      %s33 = scalar_select %p32, 0, %s31
      %s34 = sadd.s32 1, %s25
      %s35 = scalar_select %p32, %s34, %s25
      %p36 = scmp.ge.s32.totalorder %s35, 2
      %s37 = scalar_select %p36, 0, %s35
      %s38 = ssub.s32 %s25, %s37
      %p39 = scmp.eq.s32.totalorder %s38, 0
      %s41 = sadd.s32 %s40, 1
      %s42 = scalar_select %p39, %s40, %s41
      %p45 = pneg %p39
      %p46 = scmp.eq.s32.totalorder %s18, 3
      %p47 = por %p45, %p46
      %p48 = scmp.ne.s32.totalorder %s40, %s43
      %p49 = scmp.eq.s32.totalorder %s18, 0
      %p50 = por %p48, %p49
      %p51 = scmp.ne.s32.totalorder %s40, %s43
      %p52 = scmp.eq.s32.totalorder %s23, 3
      %p53 = por %p51, %p52
      %p54 = scmp.ne.s32.totalorder %s43, %s44
      %p55 = scmp.eq.s32.totalorder %s23, 0
      %p56 = por %p54, %p55
      %p57 = scmp.ne.s32.totalorder %s43, %s44
      %p58 = scmp.eq.s32.totalorder %s24, 3
      %p59 = por %p57, %p58
      %p61 = scmp.ne.s32.totalorder %s44, %s60
      %p62 = scmp.eq.s32.totalorder %s24, 0
      %p63 = por %p61, %p62
      %s64 = ssub.s32 %s25, %s37
      %s65 = ssub.s32 %s26, %s33
      %s66 = sor.u32 %s64, %s65
      %p67 = scmp.eq.s32.totalorder %s66, 0
      %s69 = sadd.s32 %s68, 1
      %s70 = scalar_select %p67, %s68, %s69
      %p73 = pneg %p67
      %p74 = scmp.eq.s32.totalorder %s18, 3
      %p75 = por %p73, %p74
      %p76 = scmp.ne.s32.totalorder %s68, %s71
      %p77 = scmp.eq.s32.totalorder %s18, 0
      %p78 = por %p76, %p77
      %p79 = scmp.ne.s32.totalorder %s68, %s71
      %p80 = scmp.eq.s32.totalorder %s23, 3
      %p81 = por %p79, %p80
      %p82 = scmp.ne.s32.totalorder %s71, %s72
      %p83 = scmp.eq.s32.totalorder %s23, 0
      %p84 = por %p82, %p83
      %p85 = scmp.ne.s32.totalorder %s71, %s72
      %p86 = scmp.eq.s32.totalorder %s24, 3
      %p87 = por %p85, %p86
      %p89 = scmp.ne.s32.totalorder %s72, %s88
      %p90 = scmp.eq.s32.totalorder %s24, 0
      %p91 = por %p89, %p90
      %s92 = ssub.s32 %s25, %s37
      %p93 = scmp.eq.s32.totalorder %s92, 0
      %s95 = sadd.s32 %s94, 1
      %s96 = scalar_select %p93, %s94, %s95
      %p99 = pneg %p93
      %p100 = scmp.eq.s32.totalorder %s18, 3
      %p101 = por %p99, %p100
      %p102 = scmp.ne.s32.totalorder %s94, %s97
      %p103 = scmp.eq.s32.totalorder %s18, 0
      %p104 = por %p102, %p103
      %p105 = scmp.ne.s32.totalorder %s94, %s97
      %p106 = scmp.eq.s32.totalorder %s23, 3
      %p107 = por %p105, %p106
      %p108 = scmp.ne.s32.totalorder %s97, %s98
      %p109 = scmp.eq.s32.totalorder %s23, 0
      %p110 = por %p108, %p109
      %p111 = scmp.ne.s32.totalorder %s97, %s98
      %p112 = scmp.eq.s32.totalorder %s24, 3
      %p113 = por %p111, %p112
      %p115 = scmp.ne.s32.totalorder %s98, %s114
      %p116 = scmp.eq.s32.totalorder %s24, 0
      %p117 = por %p115, %p116
      %s118 = ssub.s32 %s25, %s37
      %s119 = ssub.s32 %s26, %s33
      %s120 = sor.u32 %s118, %s119
      %p121 = scmp.eq.s32.totalorder %s120, 0
      %s123 = sadd.s32 %s122, 1
      %s124 = scalar_select %p121, %s122, %s123
      %p127 = pneg %p121
      %p128 = scmp.eq.s32.totalorder %s18, 3
      %p129 = por %p127, %p128
      %p130 = scmp.ne.s32.totalorder %s122, %s125
      %p131 = scmp.eq.s32.totalorder %s18, 0
      %p132 = por %p130, %p131
      %p133 = scmp.ne.s32.totalorder %s122, %s125
      %p134 = scmp.eq.s32.totalorder %s23, 3
      %p135 = por %p133, %p134
      %p136 = scmp.ne.s32.totalorder %s125, %s126
      %p137 = scmp.eq.s32.totalorder %s23, 0
      %p138 = por %p136, %p137
      %p139 = scmp.ne.s32.totalorder %s125, %s126
      %p140 = scmp.eq.s32.totalorder %s24, 3
      %p141 = por %p139, %p140
      %p143 = scmp.ne.s32.totalorder %s126, %s142
      %p144 = scmp.eq.s32.totalorder %s24, 0
      %p145 = por %p143, %p144
      %p146 = scmp.le.s32.totalorder 1, %s18
      %p147 = scmp.lt.s32.totalorder %s18, 5
      %p148 = pnand %p146, %p147
      %p149 = pneg %p148
      // Predicated region
      $region9: #{tpu_custom_call.1} parent=5 // pred_check
        _
      $region10: #{tpu_custom_call.1} parent=5 // pred_check_branch
        %151 = sbr.rel (%p148) target = $region12
      $region11: #{tpu_custom_call.1} parent=5 // pred_region
        %s152 = ssub.s32 %s18, 1
      $region12: #{tpu_custom_call.1} parent=5 // pred_fallthru
        _
      %p153 = scmp.lt.s32.totalorder %s18, 4
      // Predicated region
      $region13: #{tpu_custom_call.1} parent=5 // pred_check
        %p154 = pneg %p153
      $region14: #{tpu_custom_call.1} parent=5 // pred_check_branch
        %156 = sbr.rel (%p154) target = $region16
      $region15: #{tpu_custom_call.1} parent=5 // pred_region
        // Predicated region
        $region17: #{tpu_custom_call.1} parent=15 // pred_check
          %p157 = pneg %p50
        $region18: #{tpu_custom_call.1} parent=15 // pred_check_branch
          %159 = sbr.rel (%p157) target = $region20
        $region19: #{tpu_custom_call.1} parent=15 // pred_region
          %s160 = sand.u32 %s40, 1
          %s161 = scalar_lea.sflag [#allocation3], %s160
          %s162 = sand.u32 %s40, 1
          %s163 = smul.addr %s162, 32
          %s164 = scalar_lea.vmem [#allocation2], %s163
          %s166 = ssub.s32 512, 512
          %167 = vsyncadd %s161, %s166
          %s168 = smul.addr %s25, 4
          %s169 = smul.addr %s168, 128
          %s170 = scalar_lea.hbm %s0, %s169
          %s171 = sshll.u32 %s164, 4
          %s172 = int_to_ptr.vmem [resolvable:$true] %s171
          %177 = dma.hbm_to_vmem [thread:$0]  %s170, 512, %s172, %s161, 128, 128, 8
        $region20: #{tpu_custom_call.1} parent=15 // pred_fallthru
          _
        // Predicated region
        $region21: #{tpu_custom_call.1} parent=15 // pred_check
          %p178 = pneg %p78
        $region22: #{tpu_custom_call.1} parent=15 // pred_check_branch
          %180 = sbr.rel (%p178) target = $region24
        $region23: #{tpu_custom_call.1} parent=15 // pred_region
          %s181 = sand.u32 %s18, 1
          %s182 = scalar_lea.sflag [#allocation6], %s181
          %s183 = sand.u32 %s68, 1
          %s184 = smul.addr %s183, 2
          %s185 = scalar_lea.vmem [#allocation5], %s184
          %s187 = ssub.s32 32, 32
          %188 = vsyncadd %s182, %s187
          %s189 = smul.addr %s25, 2
          %s190 = sadd.s32 %s26, %s189
          %s191 = smul.addr %s190, 32
          %s192 = scalar_lea.hbm %s1, %s191
          %s194 = sshll.u32 %s185, 4
          %s195 = int_to_ptr.vmem [resolvable:$true] %s194
          %197 = dma.hbm_to_vmem [thread:$0]  %s192, 32, %s195, %s182
        $region24: #{tpu_custom_call.1} parent=15 // pred_fallthru
          _
        // Predicated region
        $region25: #{tpu_custom_call.1} parent=15 // pred_check
          %p198 = pneg %p104
        $region26: #{tpu_custom_call.1} parent=15 // pred_check_branch
          %200 = sbr.rel (%p198) target = $region28
        $region27: #{tpu_custom_call.1} parent=15 // pred_region
          %s201 = sand.u32 %s18, 1
          %s202 = scalar_lea.sflag [#allocation6], %s201
          %s203 = sand.u32 %s94, 1
          %s204 = smul.addr %s203, 64
          %s205 = scalar_lea.vmem [#allocation7], %s204
          %s207 = ssub.s32 1024, 1024
          %208 = vsyncadd %s202, %s207
          %s209 = smul.addr %s25, 8
          %s210 = smul.addr %s209, 128
          %s211 = scalar_lea.hbm %s2, %s210
          %s212 = sshll.u32 %s205, 4
          %s213 = int_to_ptr.vmem [resolvable:$true] %s212
          %218 = dma.hbm_to_vmem [thread:$0]  %s211, 1024, %s213, %s202, 128, 128, 8
        $region28: #{tpu_custom_call.1} parent=15 // pred_fallthru
          _
      $region16: #{tpu_custom_call.1} parent=5 // pred_fallthru
        _
      %p219 = scmp.le.s32.totalorder 1, %s18
      %p220 = scmp.lt.s32.totalorder %s18, 5
      %p221 = pnand %p219, %p220
      %p222 = pneg %p221
      // Predicated region
      $region29: #{tpu_custom_call.1} parent=5 // pred_check
        _
      $region30: #{tpu_custom_call.1} parent=5 // pred_check_branch
        %224 = sbr.rel (%p221) target = $region32
      $region31: #{tpu_custom_call.1} parent=5 // pred_region
        %s225 = ssub.s32 %s18, 1
        %s226 = sand.u32 %s43, 1
        %s227 = scalar_lea.sflag [#allocation3], %s226
        %s228 = sand.u32 %s43, 1
        %s229 = smul.addr %s228, 32
        %s230 = scalar_lea.vmem [#allocation2], %s229
        // Predicated region
        $region33: #{tpu_custom_call.1} parent=31 // pred_check
          %p231 = pneg %p56
        $region34: #{tpu_custom_call.1} parent=31 // pred_check_branch
          %233 = sbr.rel (%p231) target = $region36
        $region35: #{tpu_custom_call.1} parent=31 // pred_region
          %234 = dma.done %s227, 512
        $region36: #{tpu_custom_call.1} parent=31 // pred_fallthru
          _
        %s235 = sand.u32 %s23, 1
        %s236 = scalar_lea.sflag [#allocation6], %s235
        %s237 = sand.u32 %s71, 1
        %s238 = smul.addr %s237, 2
        %s239 = scalar_lea.vmem [#allocation5], %s238
        // Predicated region
        $region37: #{tpu_custom_call.1} parent=31 // pred_check
          %p240 = pneg %p84
        $region38: #{tpu_custom_call.1} parent=31 // pred_check_branch
          %242 = sbr.rel (%p240) target = $region40
        $region39: #{tpu_custom_call.1} parent=31 // pred_region
          %243 = dma.done %s236, 32
        $region40: #{tpu_custom_call.1} parent=31 // pred_fallthru
          _
        %s244 = sand.u32 %s23, 1
        %s245 = scalar_lea.sflag [#allocation6], %s244
        %s246 = sand.u32 %s97, 1
        %s247 = smul.addr %s246, 64
        %s248 = scalar_lea.vmem [#allocation7], %s247
        // Predicated region
        $region41: #{tpu_custom_call.1} parent=31 // pred_check
          %p249 = pneg %p110
        $region42: #{tpu_custom_call.1} parent=31 // pred_check_branch
          %251 = sbr.rel (%p249) target = $region44
        $region43: #{tpu_custom_call.1} parent=31 // pred_region
          %252 = dma.done %s245, 1024
        $region44: #{tpu_custom_call.1} parent=31 // pred_fallthru
          _
        %s253 = sand.u32 %s43, 1
        %s254 = scalar_lea.sflag [#allocation3], %s253
        %s255 = sand.u32 %s43, 1
        %s256 = smul.addr %s255, 32
        %s257 = scalar_lea.vmem [#allocation2], %s256
        %p258 = pneg %p56
        %p259 = pneg %p53
        %s260 = sand.u32 %s23, 1
        %s261 = scalar_lea.sflag [#allocation6], %s260
        %s262 = sand.u32 %s71, 1
        %s263 = smul.addr %s262, 2
        %s264 = scalar_lea.vmem [#allocation5], %s263
        %p265 = pneg %p84
        %p266 = pneg %p81
        %s267 = sand.u32 %s23, 1
        %s268 = scalar_lea.sflag [#allocation6], %s267
        %s269 = sand.u32 %s97, 1
        %s270 = smul.addr %s269, 64
        %s271 = scalar_lea.vmem [#allocation7], %s270
        %p272 = pneg %p110
        %p273 = pneg %p107
        %p274 = pneg %p138
        %p275 = pneg %p135
        %s276 = sand.u32 %s125, 1
        %s277 = scalar_lea.sflag [#allocation4], %s276
        %s278 = sand.u32 %s125, 1
        %s279 = smul.addr %s278, 4
        %s280 = scalar_lea.vmem [#allocation8], %s279
        %s281 = smul.u32 %s28, 128
        %v282 = vlaneseq
        %v283 = vand.u32 %v282, 127
        %v284 = vstv %s281
        %v285 = vadd.s32 %v284, %v283
        %v286 = vcvt.s32.f32 %v285
        %v287 = vrcp.pop 16.0
        %v288 = vmul.f32 %v286, %v287
        %v289 = vfloor.f32 %v288
        %v290 = vmul.f32 %v289, 16.0
        %v291 = vsub.f32 %v286, %v290
        %v292 = vld [vmem:[%s239] sm:$0x3]
        %v293 = vadd.f32 %v289, %v292
        %v294 = vmul.f32 %v293, 1.0666667
        %v295 = vsub.f32 %v294, 0.5
        %v296 = vadd.f32 %v291, %v292
        %v297 = vmul.f32 %v296, 1.0666667
        %v298 = vsub.f32 %v297, 0.5
        %v299 = vlaneseq
        %v300 = vshrl.u32 %v299, 7
        %v301 = vadd.s32 %v300, 8
        %v302 = vcvt.s32.f32 %v300
        %v303 = vcvt.s32.f32 %v301
        %v304 = vlaneseq
        %v305 = vshrl.u32 %v304, 7
        %v306 = vsub.s32 0, %v305
        %v307 = vrot.slane %v295, %v306
        %v308 = vsub.f32 %v307, %v302
        %v309 = vsub.f32 %v307, %v303
        %v310 = vand.u32 2147483647, %v308
        %v311 = vand.u32 2147483647, %v309
        %v312 = vsub.f32 1.0, %v310
        %v313 = vsub.f32 1.0, %v311
        %v314 = vmax.f32 %v312, 0.0
        %v315 = vmax.f32 %v313, 0.0
        %v316 = vlaneseq
        %v317 = vshrl.u32 %v316, 7
        %v318 = vsub.s32 1, %v317
        %v319 = vrot.slane %v298, %v318
        %v320 = vsub.f32 %v319, %v302
        %v321 = vsub.f32 %v319, %v303
        %v322 = vand.u32 2147483647, %v320
        %v323 = vand.u32 2147483647, %v321
        %v324 = vsub.f32 1.0, %v322
        %v325 = vsub.f32 1.0, %v323
        %v326 = vmax.f32 %v324, 0.0
        %v327 = vmax.f32 %v325, 0.0
        %v328 = vld [vmem:[%s230] sm:$0xff]
        %v329 = vld [vmem:[%s230 + $0x8] sm:$0xff]
        %vm330 = vcmask 130048
        %v332 = vsel %vm330, %v328, 0
        %v335 = vsel %vm330, %v329, 0
        %337 = vmatprep.subr.mxu0 0.0
        %v338 = vand.u32 %v326, 4294901760
        %339 = vmatpush1.msra.mxu0 %v338
        %340 = vmatprep.subr.mxu0 0.0
        %v341 = vand.u32 %v327, 4294901760
        %342 = vmatpush1.msra.mxu0 %v341
        %343 = vmatprep.subr.mxu0 0.0
        %344 = vmatpush1.msra.mxu0 0.0
        %345 = vmatprep.subr.mxu0 0.0
        %346 = vmatpush1.msra.mxu0 0.0
        %347 = vmatprep.subr.mxu0 0.0
        %348 = vmatpush1.msra.mxu0 0.0
        %349 = vmatprep.subr.mxu0 0.0
        %350 = vmatpush1.msra.mxu0 0.0
        %351 = vmatprep.subr.mxu0 0.0
        %352 = vmatpush1.msra.mxu0 0.0
        %353 = vmatprep.subr.mxu0 0.0
        %354 = vmatpush1.msra.mxu0 0.0
        %355 = vmatprep.subr.mxu0 0.0
        %356 = vmatpush1.msra.mxu0 0.0
        %357 = vmatprep.subr.mxu0 0.0
        %358 = vmatpush1.msra.mxu0 0.0
        %359 = vmatprep.subr.mxu0 0.0
        %360 = vmatpush1.msra.mxu0 0.0
        %361 = vmatprep.subr.mxu0 0.0
        %362 = vmatpush1.msra.mxu0 0.0
        %363 = vmatprep.subr.mxu0 0.0
        %364 = vmatpush1.msra.mxu0 0.0
        %365 = vmatprep.subr.mxu0 0.0
        %366 = vmatpush1.msra.mxu0 0.0
        %367 = vmatprep.subr.mxu0 0.0
        %368 = vmatpush1.msra.mxu0 0.0
        %369 = vmatprep.subr.mxu0 0.0
        %370 = vmatpush1.msra.mxu0 0.0
        %371 = vmatprep.subr.mxu0 0.0
        %372 = vmatpush1.msra.mxu0 0.0
        %373 = vmatprep.subr.mxu0 0.0
        %374 = vmatpush1.msra.mxu0 0.0
        %375 = vmatprep.subr.mxu0 0.0
        %376 = vmatpush1.msra.mxu0 0.0
        %377 = vmatprep.subr.mxu0 0.0
        %378 = vmatpush1.msra.mxu0 0.0
        %379 = vmatprep.subr.mxu0 0.0
        %380 = vmatpush1.msra.mxu0 0.0
        %381 = vmatprep.subr.mxu0 0.0
        %382 = vmatpush1.msra.mxu0 0.0
        %383 = vmatprep.subr.mxu0 0.0
        %384 = vmatpush1.msra.mxu0 0.0
        %385 = vmatprep.subr.mxu0 0.0
        %386 = vmatpush1.msra.mxu0 0.0
        %387 = vmatprep.subr.mxu0 0.0
        %388 = vmatpush1.msra.mxu0 0.0
        %389 = vmatprep.subr.mxu0 0.0
        %390 = vmatpush1.msra.mxu0 0.0
        %391 = vmatprep.subr.mxu0 0.0
        %392 = vmatpush1.msra.mxu0 0.0
        %393 = vmatprep.subr.mxu0 0.0
        %394 = vmatpush1.msra.mxu0 0.0
        %395 = vmatprep.subr.mxu0 0.0
        %396 = vmatpush1.msra.mxu0 0.0
        %397 = vmatprep.subr.mxu0 0.0
        %398 = vmatpush1.msra.mxu0 0.0
        %399 = vmatprep.subr.mxu0 0.0
        %400 = vmatpush1.msra.mxu0 0.0
        %401 = vmatprep.subr.mxu0 0.0
        %402 = vmatpush1.msra.mxu0 0.0
        %403 = vmatprep.mubr.f32.mxu0 0.0
        %v404 = vand.u32 %v332, 4294901760
        %v405 = vsub.f32 %v332, %v404
        %v406 = vand.u32 %v405, 4294901760
        %v407 = vsub.f32 %v405, %v406
        %v408 = vand.u32 %v407, 4294901760
        %409 = vmatmul.mubr.f32.gmra.mrb[0].mxu0 %v408
        %v410 = vpop.f32.mrb[0].mxu0
        %v411 = vadd.f32 0.0, %v410
        %v412 = vpop.f32.mrb[0].mxu0
        %413 = vmatprep.mubr.f32.mxu0 0.0
        %v414 = vand.u32 %v335, 4294901760
        %v415 = vsub.f32 %v335, %v414
        %v416 = vand.u32 %v415, 4294901760
        %v417 = vsub.f32 %v415, %v416
        %v418 = vand.u32 %v417, 4294901760
        %419 = vmatmul.mubr.f32.gmra.mrb[0].mxu0 %v418
        %v420 = vpop.f32.mrb[0].mxu0
        %v421 = vadd.f32 0.0, %v420
        %v422 = vpop.f32.mrb[0].mxu0
        %423 = vdwg.mxu0
        %424 = vmatprep.subr.mxu0 0.0
        %v425 = vand.u32 %v326, 4294901760
        %v426 = vsub.f32 %v326, %v425
        %v427 = vand.u32 %v426, 4294901760
        %v428 = vsub.f32 %v426, %v427
        %v429 = vand.u32 %v428, 4294901760
        %430 = vmatpush1.msra.mxu0 %v429
        %431 = vmatprep.subr.mxu0 0.0
        %v432 = vand.u32 %v327, 4294901760
        %v433 = vsub.f32 %v327, %v432
        %v434 = vand.u32 %v433, 4294901760
        %v435 = vsub.f32 %v433, %v434
        %v436 = vand.u32 %v435, 4294901760
        %437 = vmatpush1.msra.mxu0 %v436
        %438 = vmatprep.subr.mxu0 0.0
        %439 = vmatpush1.msra.mxu0 0.0
        %440 = vmatprep.subr.mxu0 0.0
        %441 = vmatpush1.msra.mxu0 0.0
        %442 = vmatprep.subr.mxu0 0.0
        %443 = vmatpush1.msra.mxu0 0.0
        %444 = vmatprep.subr.mxu0 0.0
        %445 = vmatpush1.msra.mxu0 0.0
        %446 = vmatprep.subr.mxu0 0.0
        %447 = vmatpush1.msra.mxu0 0.0
        %448 = vmatprep.subr.mxu0 0.0
        %449 = vmatpush1.msra.mxu0 0.0
        %450 = vmatprep.subr.mxu0 0.0
        %451 = vmatpush1.msra.mxu0 0.0
        %452 = vmatprep.subr.mxu0 0.0
        %453 = vmatpush1.msra.mxu0 0.0
        %454 = vmatprep.subr.mxu0 0.0
        %455 = vmatpush1.msra.mxu0 0.0
        %456 = vmatprep.subr.mxu0 0.0
        %457 = vmatpush1.msra.mxu0 0.0
        %458 = vmatprep.subr.mxu0 0.0
        %459 = vmatpush1.msra.mxu0 0.0
        %460 = vmatprep.subr.mxu0 0.0
        %461 = vmatpush1.msra.mxu0 0.0
        %462 = vmatprep.subr.mxu0 0.0
        %463 = vmatpush1.msra.mxu0 0.0
        %464 = vmatprep.subr.mxu0 0.0
        %465 = vmatpush1.msra.mxu0 0.0
        %466 = vmatprep.subr.mxu0 0.0
        %467 = vmatpush1.msra.mxu0 0.0
        %468 = vmatprep.subr.mxu0 0.0
        %469 = vmatpush1.msra.mxu0 0.0
        %470 = vmatprep.subr.mxu0 0.0
        %471 = vmatpush1.msra.mxu0 0.0
        %472 = vmatprep.subr.mxu0 0.0
        %473 = vmatpush1.msra.mxu0 0.0
        %474 = vmatprep.subr.mxu0 0.0
        %475 = vmatpush1.msra.mxu0 0.0
        %476 = vmatprep.subr.mxu0 0.0
        %477 = vmatpush1.msra.mxu0 0.0
        %478 = vmatprep.subr.mxu0 0.0
        %479 = vmatpush1.msra.mxu0 0.0
        %480 = vmatprep.subr.mxu0 0.0
        %481 = vmatpush1.msra.mxu0 0.0
        %482 = vmatprep.subr.mxu0 0.0
        %483 = vmatpush1.msra.mxu0 0.0
        %484 = vmatprep.subr.mxu0 0.0
        %485 = vmatpush1.msra.mxu0 0.0
        %486 = vmatprep.subr.mxu0 0.0
        %487 = vmatpush1.msra.mxu0 0.0
        %488 = vmatprep.subr.mxu0 0.0
        %489 = vmatpush1.msra.mxu0 0.0
        %490 = vmatprep.subr.mxu0 0.0
        %491 = vmatpush1.msra.mxu0 0.0
        %492 = vmatprep.subr.mxu0 0.0
        %493 = vmatpush1.msra.mxu0 0.0
        %494 = vmatprep.subr.mxu0 0.0
        %495 = vmatpush1.msra.mxu0 0.0
        %496 = vmatprep.subr.mxu0 0.0
        %497 = vmatpush1.msra.mxu0 0.0
        %498 = vmatprep.mubr.f32.mxu0 0.0
        %v499 = vand.u32 %v332, 4294901760
        %500 = vmatmul.mubr.f32.gmra.mrb[0].mxu0 %v499
        %v501 = vpop.f32.mrb[0].mxu0
        %v502 = vadd.f32 %v411, %v501
        %v503 = vpop.f32.mrb[0].mxu0
        %504 = vmatprep.mubr.f32.mxu0 0.0
        %v505 = vand.u32 %v335, 4294901760
        %506 = vmatmul.mubr.f32.gmra.mrb[0].mxu0 %v505
        %v507 = vpop.f32.mrb[0].mxu0
        %v508 = vadd.f32 %v421, %v507
        %v509 = vpop.f32.mrb[0].mxu0
        %510 = vdwg.mxu0
        %511 = vmatprep.subr.mxu0 0.0
        %v512 = vand.u32 %v326, 4294901760
        %v513 = vsub.f32 %v326, %v512
        %514 = vmatpush1.msra.mxu0 %v513
        %515 = vmatprep.subr.mxu0 0.0
        %v516 = vand.u32 %v327, 4294901760
        %v517 = vsub.f32 %v327, %v516
        %518 = vmatpush1.msra.mxu0 %v517
        %519 = vmatprep.subr.mxu0 0.0
        %520 = vmatpush1.msra.mxu0 0.0
        %521 = vmatprep.subr.mxu0 0.0
        %522 = vmatpush1.msra.mxu0 0.0
        %523 = vmatprep.subr.mxu0 0.0
        %524 = vmatpush1.msra.mxu0 0.0
        %525 = vmatprep.subr.mxu0 0.0
        %526 = vmatpush1.msra.mxu0 0.0
        %527 = vmatprep.subr.mxu0 0.0
        %528 = vmatpush1.msra.mxu0 0.0
        %529 = vmatprep.subr.mxu0 0.0
        %530 = vmatpush1.msra.mxu0 0.0
        %531 = vmatprep.subr.mxu0 0.0
        %532 = vmatpush1.msra.mxu0 0.0
        %533 = vmatprep.subr.mxu0 0.0
        %534 = vmatpush1.msra.mxu0 0.0
        %535 = vmatprep.subr.mxu0 0.0
        %536 = vmatpush1.msra.mxu0 0.0
        %537 = vmatprep.subr.mxu0 0.0
        %538 = vmatpush1.msra.mxu0 0.0
        %539 = vmatprep.subr.mxu0 0.0
        %540 = vmatpush1.msra.mxu0 0.0
        %541 = vmatprep.subr.mxu0 0.0
        %542 = vmatpush1.msra.mxu0 0.0
        %543 = vmatprep.subr.mxu0 0.0
        %544 = vmatpush1.msra.mxu0 0.0
        %545 = vmatprep.subr.mxu0 0.0
        %546 = vmatpush1.msra.mxu0 0.0
        %547 = vmatprep.subr.mxu0 0.0
        %548 = vmatpush1.msra.mxu0 0.0
        %549 = vmatprep.subr.mxu0 0.0
        %550 = vmatpush1.msra.mxu0 0.0
        %551 = vmatprep.subr.mxu0 0.0
        %552 = vmatpush1.msra.mxu0 0.0
        %553 = vmatprep.subr.mxu0 0.0
        %554 = vmatpush1.msra.mxu0 0.0
        %555 = vmatprep.subr.mxu0 0.0
        %556 = vmatpush1.msra.mxu0 0.0
        %557 = vmatprep.subr.mxu0 0.0
        %558 = vmatpush1.msra.mxu0 0.0
        %559 = vmatprep.subr.mxu0 0.0
        %560 = vmatpush1.msra.mxu0 0.0
        %561 = vmatprep.subr.mxu0 0.0
        %562 = vmatpush1.msra.mxu0 0.0
        %563 = vmatprep.subr.mxu0 0.0
        %564 = vmatpush1.msra.mxu0 0.0
        %565 = vmatprep.subr.mxu0 0.0
        %566 = vmatpush1.msra.mxu0 0.0
        %567 = vmatprep.subr.mxu0 0.0
        %568 = vmatpush1.msra.mxu0 0.0
        %569 = vmatprep.subr.mxu0 0.0
        %570 = vmatpush1.msra.mxu0 0.0
        %571 = vmatprep.subr.mxu0 0.0
        %572 = vmatpush1.msra.mxu0 0.0
        %573 = vmatprep.subr.mxu0 0.0
        %574 = vmatpush1.msra.mxu0 0.0
        %575 = vmatprep.subr.mxu0 0.0
        %576 = vmatpush1.msra.mxu0 0.0
        %577 = vmatprep.subr.mxu0 0.0
        %578 = vmatpush1.msra.mxu0 0.0
        %579 = vmatprep.mubr.f32.mxu0 0.0
        %v580 = vand.u32 %v332, 4294901760
        %v581 = vsub.f32 %v332, %v580
        %582 = vmatmul.mubr.f32.gmra.mrb[0].mxu0 %v581
        %v583 = vpop.f32.mrb[0].mxu0
        %v584 = vadd.f32 %v502, %v583
        %v585 = vpop.f32.mrb[0].mxu0
        %586 = vmatprep.mubr.f32.mxu0 0.0
        %v587 = vand.u32 %v335, 4294901760
        %v588 = vsub.f32 %v335, %v587
        %589 = vmatmul.mubr.f32.gmra.mrb[0].mxu0 %v588
        %v590 = vpop.f32.mrb[0].mxu0
        %v591 = vadd.f32 %v508, %v590
        %v592 = vpop.f32.mrb[0].mxu0
        %593 = vdwg.mxu0
        %594 = vmatprep.subr.mxu0 0.0
        %v595 = vand.u32 %v326, 4294901760
        %596 = vmatpush1.msra.mxu0 %v595
        %597 = vmatprep.subr.mxu0 0.0
        %v598 = vand.u32 %v327, 4294901760
        %599 = vmatpush1.msra.mxu0 %v598
        %600 = vmatprep.subr.mxu0 0.0
        %601 = vmatpush1.msra.mxu0 0.0
        %602 = vmatprep.subr.mxu0 0.0
        %603 = vmatpush1.msra.mxu0 0.0
        %604 = vmatprep.subr.mxu0 0.0
        %605 = vmatpush1.msra.mxu0 0.0
        %606 = vmatprep.subr.mxu0 0.0
        %607 = vmatpush1.msra.mxu0 0.0
        %608 = vmatprep.subr.mxu0 0.0
        %609 = vmatpush1.msra.mxu0 0.0
        %610 = vmatprep.subr.mxu0 0.0
        %611 = vmatpush1.msra.mxu0 0.0
        %612 = vmatprep.subr.mxu0 0.0
        %613 = vmatpush1.msra.mxu0 0.0
        %614 = vmatprep.subr.mxu0 0.0
        %615 = vmatpush1.msra.mxu0 0.0
        %616 = vmatprep.subr.mxu0 0.0
        %617 = vmatpush1.msra.mxu0 0.0
        %618 = vmatprep.subr.mxu0 0.0
        %619 = vmatpush1.msra.mxu0 0.0
        %620 = vmatprep.subr.mxu0 0.0
        %621 = vmatpush1.msra.mxu0 0.0
        %622 = vmatprep.subr.mxu0 0.0
        %623 = vmatpush1.msra.mxu0 0.0
        %624 = vmatprep.subr.mxu0 0.0
        %625 = vmatpush1.msra.mxu0 0.0
        %626 = vmatprep.subr.mxu0 0.0
        %627 = vmatpush1.msra.mxu0 0.0
        %628 = vmatprep.subr.mxu0 0.0
        %629 = vmatpush1.msra.mxu0 0.0
        %630 = vmatprep.subr.mxu0 0.0
        %631 = vmatpush1.msra.mxu0 0.0
        %632 = vmatprep.subr.mxu0 0.0
        %633 = vmatpush1.msra.mxu0 0.0
        %634 = vmatprep.subr.mxu0 0.0
        %635 = vmatpush1.msra.mxu0 0.0
        %636 = vmatprep.subr.mxu0 0.0
        %637 = vmatpush1.msra.mxu0 0.0
        %638 = vmatprep.subr.mxu0 0.0
        %639 = vmatpush1.msra.mxu0 0.0
        %640 = vmatprep.subr.mxu0 0.0
        %641 = vmatpush1.msra.mxu0 0.0
        %642 = vmatprep.subr.mxu0 0.0
        %643 = vmatpush1.msra.mxu0 0.0
        %644 = vmatprep.subr.mxu0 0.0
        %645 = vmatpush1.msra.mxu0 0.0
        %646 = vmatprep.subr.mxu0 0.0
        %647 = vmatpush1.msra.mxu0 0.0
        %648 = vmatprep.subr.mxu0 0.0
        %649 = vmatpush1.msra.mxu0 0.0
        %650 = vmatprep.subr.mxu0 0.0
        %651 = vmatpush1.msra.mxu0 0.0
        %652 = vmatprep.subr.mxu0 0.0
        %653 = vmatpush1.msra.mxu0 0.0
        %654 = vmatprep.subr.mxu0 0.0
        %655 = vmatpush1.msra.mxu0 0.0
        %656 = vmatprep.subr.mxu0 0.0
        %657 = vmatpush1.msra.mxu0 0.0
        %658 = vmatprep.subr.mxu0 0.0
        %659 = vmatpush1.msra.mxu0 0.0
        %660 = vmatprep.mubr.f32.mxu0 0.0
        %v661 = vand.u32 %v332, 4294901760
        %v662 = vsub.f32 %v332, %v661
        %v663 = vand.u32 %v662, 4294901760
        %664 = vmatmul.mubr.f32.gmra.mrb[0].mxu0 %v663
        %v665 = vpop.f32.mrb[0].mxu0
        %v666 = vadd.f32 %v584, %v665
        %v667 = vpop.f32.mrb[0].mxu0
        %668 = vmatprep.mubr.f32.mxu0 0.0
        %v669 = vand.u32 %v335, 4294901760
        %v670 = vsub.f32 %v335, %v669
        %v671 = vand.u32 %v670, 4294901760
        %672 = vmatmul.mubr.f32.gmra.mrb[0].mxu0 %v671
        %v673 = vpop.f32.mrb[0].mxu0
        %v674 = vadd.f32 %v591, %v673
        %v675 = vpop.f32.mrb[0].mxu0
        %676 = vdwg.mxu0
        %677 = vmatprep.subr.mxu0 0.0
        %v678 = vand.u32 %v326, 4294901760
        %v679 = vsub.f32 %v326, %v678
        %v680 = vand.u32 %v679, 4294901760
        %681 = vmatpush1.msra.mxu0 %v680
        %682 = vmatprep.subr.mxu0 0.0
        %v683 = vand.u32 %v327, 4294901760
        %v684 = vsub.f32 %v327, %v683
        %v685 = vand.u32 %v684, 4294901760
        %686 = vmatpush1.msra.mxu0 %v685
        %687 = vmatprep.subr.mxu0 0.0
        %688 = vmatpush1.msra.mxu0 0.0
        %689 = vmatprep.subr.mxu0 0.0
        %690 = vmatpush1.msra.mxu0 0.0
        %691 = vmatprep.subr.mxu0 0.0
        %692 = vmatpush1.msra.mxu0 0.0
        %693 = vmatprep.subr.mxu0 0.0
        %694 = vmatpush1.msra.mxu0 0.0
        %695 = vmatprep.subr.mxu0 0.0
        %696 = vmatpush1.msra.mxu0 0.0
        %697 = vmatprep.subr.mxu0 0.0
        %698 = vmatpush1.msra.mxu0 0.0
        %699 = vmatprep.subr.mxu0 0.0
        %700 = vmatpush1.msra.mxu0 0.0
        %701 = vmatprep.subr.mxu0 0.0
        %702 = vmatpush1.msra.mxu0 0.0
        %703 = vmatprep.subr.mxu0 0.0
        %704 = vmatpush1.msra.mxu0 0.0
        %705 = vmatprep.subr.mxu0 0.0
        %706 = vmatpush1.msra.mxu0 0.0
        %707 = vmatprep.subr.mxu0 0.0
        %708 = vmatpush1.msra.mxu0 0.0
        %709 = vmatprep.subr.mxu0 0.0
        %710 = vmatpush1.msra.mxu0 0.0
        %711 = vmatprep.subr.mxu0 0.0
        %712 = vmatpush1.msra.mxu0 0.0
        %713 = vmatprep.subr.mxu0 0.0
        %714 = vmatpush1.msra.mxu0 0.0
        %715 = vmatprep.subr.mxu0 0.0
        %716 = vmatpush1.msra.mxu0 0.0
        %717 = vmatprep.subr.mxu0 0.0
        %718 = vmatpush1.msra.mxu0 0.0
        %719 = vmatprep.subr.mxu0 0.0
        %720 = vmatpush1.msra.mxu0 0.0
        %721 = vmatprep.subr.mxu0 0.0
        %722 = vmatpush1.msra.mxu0 0.0
        %723 = vmatprep.subr.mxu0 0.0
        %724 = vmatpush1.msra.mxu0 0.0
        %725 = vmatprep.subr.mxu0 0.0
        %726 = vmatpush1.msra.mxu0 0.0
        %727 = vmatprep.subr.mxu0 0.0
        %728 = vmatpush1.msra.mxu0 0.0
        %729 = vmatprep.subr.mxu0 0.0
        %730 = vmatpush1.msra.mxu0 0.0
        %731 = vmatprep.subr.mxu0 0.0
        %732 = vmatpush1.msra.mxu0 0.0
        %733 = vmatprep.subr.mxu0 0.0
        %734 = vmatpush1.msra.mxu0 0.0
        %735 = vmatprep.subr.mxu0 0.0
        %736 = vmatpush1.msra.mxu0 0.0
        %737 = vmatprep.subr.mxu0 0.0
        %738 = vmatpush1.msra.mxu0 0.0
        %739 = vmatprep.subr.mxu0 0.0
        %740 = vmatpush1.msra.mxu0 0.0
        %741 = vmatprep.subr.mxu0 0.0
        %742 = vmatpush1.msra.mxu0 0.0
        %743 = vmatprep.subr.mxu0 0.0
        %744 = vmatpush1.msra.mxu0 0.0
        %745 = vmatprep.subr.mxu0 0.0
        %746 = vmatpush1.msra.mxu0 0.0
        %747 = vmatprep.mubr.f32.mxu0 0.0
        %v748 = vand.u32 %v332, 4294901760
        %749 = vmatmul.mubr.f32.gmra.mrb[0].mxu0 %v748
        %v750 = vpop.f32.mrb[0].mxu0
        %v751 = vadd.f32 %v666, %v750
        %v752 = vpop.f32.mrb[0].mxu0
        %753 = vmatprep.mubr.f32.mxu0 0.0
        %v754 = vand.u32 %v335, 4294901760
        %755 = vmatmul.mubr.f32.gmra.mrb[0].mxu0 %v754
        %v756 = vpop.f32.mrb[0].mxu0
        %v757 = vadd.f32 %v674, %v756
        %v758 = vpop.f32.mrb[0].mxu0
        %759 = vdwg.mxu0
        %760 = vmatprep.subr.mxu0 0.0
        %v761 = vand.u32 %v326, 4294901760
        %762 = vmatpush1.msra.mxu0 %v761
        %763 = vmatprep.subr.mxu0 0.0
        %v764 = vand.u32 %v327, 4294901760
        %765 = vmatpush1.msra.mxu0 %v764
        %766 = vmatprep.subr.mxu0 0.0
        %767 = vmatpush1.msra.mxu0 0.0
        %768 = vmatprep.subr.mxu0 0.0
        %769 = vmatpush1.msra.mxu0 0.0
        %770 = vmatprep.subr.mxu0 0.0
        %771 = vmatpush1.msra.mxu0 0.0
        %772 = vmatprep.subr.mxu0 0.0
        %773 = vmatpush1.msra.mxu0 0.0
        %774 = vmatprep.subr.mxu0 0.0
        %775 = vmatpush1.msra.mxu0 0.0
        %776 = vmatprep.subr.mxu0 0.0
        %777 = vmatpush1.msra.mxu0 0.0
        %778 = vmatprep.subr.mxu0 0.0
        %779 = vmatpush1.msra.mxu0 0.0
        %780 = vmatprep.subr.mxu0 0.0
        %781 = vmatpush1.msra.mxu0 0.0
        %782 = vmatprep.subr.mxu0 0.0
        %783 = vmatpush1.msra.mxu0 0.0
        %784 = vmatprep.subr.mxu0 0.0
        %785 = vmatpush1.msra.mxu0 0.0
        %786 = vmatprep.subr.mxu0 0.0
        %787 = vmatpush1.msra.mxu0 0.0
        %788 = vmatprep.subr.mxu0 0.0
        %789 = vmatpush1.msra.mxu0 0.0
        %790 = vmatprep.subr.mxu0 0.0
        %791 = vmatpush1.msra.mxu0 0.0
        %792 = vmatprep.subr.mxu0 0.0
        %793 = vmatpush1.msra.mxu0 0.0
        %794 = vmatprep.subr.mxu0 0.0
        %795 = vmatpush1.msra.mxu0 0.0
        %796 = vmatprep.subr.mxu0 0.0
        %797 = vmatpush1.msra.mxu0 0.0
        %798 = vmatprep.subr.mxu0 0.0
        %799 = vmatpush1.msra.mxu0 0.0
        %800 = vmatprep.subr.mxu0 0.0
        %801 = vmatpush1.msra.mxu0 0.0
        %802 = vmatprep.subr.mxu0 0.0
        %803 = vmatpush1.msra.mxu0 0.0
        %804 = vmatprep.subr.mxu0 0.0
        %805 = vmatpush1.msra.mxu0 0.0
        %806 = vmatprep.subr.mxu0 0.0
        %807 = vmatpush1.msra.mxu0 0.0
        %808 = vmatprep.subr.mxu0 0.0
        %809 = vmatpush1.msra.mxu0 0.0
        %810 = vmatprep.subr.mxu0 0.0
        %811 = vmatpush1.msra.mxu0 0.0
        %812 = vmatprep.subr.mxu0 0.0
        %813 = vmatpush1.msra.mxu0 0.0
        %814 = vmatprep.subr.mxu0 0.0
        %815 = vmatpush1.msra.mxu0 0.0
        %816 = vmatprep.subr.mxu0 0.0
        %817 = vmatpush1.msra.mxu0 0.0
        %818 = vmatprep.subr.mxu0 0.0
        %819 = vmatpush1.msra.mxu0 0.0
        %820 = vmatprep.subr.mxu0 0.0
        %821 = vmatpush1.msra.mxu0 0.0
        %822 = vmatprep.subr.mxu0 0.0
        %823 = vmatpush1.msra.mxu0 0.0
        %824 = vmatprep.subr.mxu0 0.0
        %825 = vmatpush1.msra.mxu0 0.0
        %826 = vmatprep.mubr.f32.mxu0 0.0
        %v827 = vand.u32 %v332, 4294901760
        %828 = vmatmul.mubr.f32.gmra.mrb[0].mxu0 %v827
        %v829 = vpop.f32.mrb[0].mxu0
        %v830 = vadd.f32 %v751, %v829
        %v831 = vpop.f32.mrb[0].mxu0
        %832 = vmatprep.mubr.f32.mxu0 0.0
        %v833 = vand.u32 %v335, 4294901760
        %834 = vmatmul.mubr.f32.gmra.mrb[0].mxu0 %v833
        %v835 = vpop.f32.mrb[0].mxu0
        %v836 = vadd.f32 %v757, %v835
        %v837 = vpop.f32.mrb[0].mxu0
        %838 = vdwg.mxu0
        %v839 = vmul.f32 %v830, %v314
        %v840 = vmul.f32 %v836, %v315
        %v841 = vadd.f32 %v839, %v840
        %v842 = vrot.slane %v841, 4
        %v843 = vadd.f32 %v841, %v842
        %v844 = vrot.slane %v843, 2
        %v845 = vadd.f32 %v843, %v844
        %v846 = vrot.slane %v845, 1
        %v847 = vadd.f32 %v845, %v846
        %s848 = scalar_lea.vmem %s230, 16 [#allocation2]
        %v849 = vld [vmem:[%s848] sm:$0xff]
        %v850 = vld [vmem:[%s848 + $0x8] sm:$0xff]
        %v852 = vsel %vm330, %v849, 0
        %v855 = vsel %vm330, %v850, 0
        %857 = vmatprep.subr.mxu0 0.0
        %v858 = vand.u32 %v326, 4294901760
        %859 = vmatpush1.msra.mxu0 %v858
        %860 = vmatprep.subr.mxu0 0.0
        %v861 = vand.u32 %v327, 4294901760
        %862 = vmatpush1.msra.mxu0 %v861
        %863 = vmatprep.subr.mxu0 0.0
        %864 = vmatpush1.msra.mxu0 0.0
        %865 = vmatprep.subr.mxu0 0.0
        %866 = vmatpush1.msra.mxu0 0.0
        %867 = vmatprep.subr.mxu0 0.0
        %868 = vmatpush1.msra.mxu0 0.0
        %869 = vmatprep.subr.mxu0 0.0
        %870 = vmatpush1.msra.mxu0 0.0
        %871 = vmatprep.subr.mxu0 0.0
        %872 = vmatpush1.msra.mxu0 0.0
        %873 = vmatprep.subr.mxu0 0.0
        %874 = vmatpush1.msra.mxu0 0.0
        %875 = vmatprep.subr.mxu0 0.0
        %876 = vmatpush1.msra.mxu0 0.0
        %877 = vmatprep.subr.mxu0 0.0
        %878 = vmatpush1.msra.mxu0 0.0
        %879 = vmatprep.subr.mxu0 0.0
        %880 = vmatpush1.msra.mxu0 0.0
        %881 = vmatprep.subr.mxu0 0.0
        %882 = vmatpush1.msra.mxu0 0.0
        %883 = vmatprep.subr.mxu0 0.0
        %884 = vmatpush1.msra.mxu0 0.0
        %885 = vmatprep.subr.mxu0 0.0
        %886 = vmatpush1.msra.mxu0 0.0
        %887 = vmatprep.subr.mxu0 0.0
        %888 = vmatpush1.msra.mxu0 0.0
        %889 = vmatprep.subr.mxu0 0.0
        %890 = vmatpush1.msra.mxu0 0.0
        %891 = vmatprep.subr.mxu0 0.0
        %892 = vmatpush1.msra.mxu0 0.0
        %893 = vmatprep.subr.mxu0 0.0
        %894 = vmatpush1.msra.mxu0 0.0
        %895 = vmatprep.subr.mxu0 0.0
        %896 = vmatpush1.msra.mxu0 0.0
        %897 = vmatprep.subr.mxu0 0.0
        %898 = vmatpush1.msra.mxu0 0.0
        %899 = vmatprep.subr.mxu0 0.0
        %900 = vmatpush1.msra.mxu0 0.0
        %901 = vmatprep.subr.mxu0 0.0
        %902 = vmatpush1.msra.mxu0 0.0
        %903 = vmatprep.subr.mxu0 0.0
        %904 = vmatpush1.msra.mxu0 0.0
        %905 = vmatprep.subr.mxu0 0.0
        %906 = vmatpush1.msra.mxu0 0.0
        %907 = vmatprep.subr.mxu0 0.0
        %908 = vmatpush1.msra.mxu0 0.0
        %909 = vmatprep.subr.mxu0 0.0
        %910 = vmatpush1.msra.mxu0 0.0
        %911 = vmatprep.subr.mxu0 0.0
        %912 = vmatpush1.msra.mxu0 0.0
        %913 = vmatprep.subr.mxu0 0.0
        %914 = vmatpush1.msra.mxu0 0.0
        %915 = vmatprep.subr.mxu0 0.0
        %916 = vmatpush1.msra.mxu0 0.0
        %917 = vmatprep.subr.mxu0 0.0
        %918 = vmatpush1.msra.mxu0 0.0
        %919 = vmatprep.subr.mxu0 0.0
        %920 = vmatpush1.msra.mxu0 0.0
        %921 = vmatprep.subr.mxu0 0.0
        %922 = vmatpush1.msra.mxu0 0.0
        %923 = vmatprep.mubr.f32.mxu0 0.0
        %v924 = vand.u32 %v852, 4294901760
        %v925 = vsub.f32 %v852, %v924
        %v926 = vand.u32 %v925, 4294901760
        %v927 = vsub.f32 %v925, %v926
        %v928 = vand.u32 %v927, 4294901760
        %929 = vmatmul.mubr.f32.gmra.mrb[0].mxu0 %v928
        %v930 = vpop.f32.mrb[0].mxu0
        %v931 = vadd.f32 0.0, %v930
        %v932 = vpop.f32.mrb[0].mxu0
        %933 = vmatprep.mubr.f32.mxu0 0.0
        %v934 = vand.u32 %v855, 4294901760
        %v935 = vsub.f32 %v855, %v934
        %v936 = vand.u32 %v935, 4294901760
        %v937 = vsub.f32 %v935, %v936
        %v938 = vand.u32 %v937, 4294901760
        %939 = vmatmul.mubr.f32.gmra.mrb[0].mxu0 %v938
        %v940 = vpop.f32.mrb[0].mxu0
        %v941 = vadd.f32 0.0, %v940
        %v942 = vpop.f32.mrb[0].mxu0
        %943 = vdwg.mxu0
        %944 = vmatprep.subr.mxu0 0.0
        %v945 = vand.u32 %v326, 4294901760
        %v946 = vsub.f32 %v326, %v945
        %v947 = vand.u32 %v946, 4294901760
        %v948 = vsub.f32 %v946, %v947
        %v949 = vand.u32 %v948, 4294901760
        %950 = vmatpush1.msra.mxu0 %v949
        %951 = vmatprep.subr.mxu0 0.0
        %v952 = vand.u32 %v327, 4294901760
        %v953 = vsub.f32 %v327, %v952
        %v954 = vand.u32 %v953, 4294901760
        %v955 = vsub.f32 %v953, %v954
        %v956 = vand.u32 %v955, 4294901760
        %957 = vmatpush1.msra.mxu0 %v956
        %958 = vmatprep.subr.mxu0 0.0
        %959 = vmatpush1.msra.mxu0 0.0
        %960 = vmatprep.subr.mxu0 0.0
        %961 = vmatpush1.msra.mxu0 0.0
        %962 = vmatprep.subr.mxu0 0.0
        %963 = vmatpush1.msra.mxu0 0.0
        %964 = vmatprep.subr.mxu0 0.0
        %965 = vmatpush1.msra.mxu0 0.0
        %966 = vmatprep.subr.mxu0 0.0
        %967 = vmatpush1.msra.mxu0 0.0
        %968 = vmatprep.subr.mxu0 0.0
        %969 = vmatpush1.msra.mxu0 0.0
        %970 = vmatprep.subr.mxu0 0.0
        %971 = vmatpush1.msra.mxu0 0.0
        %972 = vmatprep.subr.mxu0 0.0
        %973 = vmatpush1.msra.mxu0 0.0
        %974 = vmatprep.subr.mxu0 0.0
        %975 = vmatpush1.msra.mxu0 0.0
        %976 = vmatprep.subr.mxu0 0.0
        %977 = vmatpush1.msra.mxu0 0.0
        %978 = vmatprep.subr.mxu0 0.0
        %979 = vmatpush1.msra.mxu0 0.0
        %980 = vmatprep.subr.mxu0 0.0
        %981 = vmatpush1.msra.mxu0 0.0
        %982 = vmatprep.subr.mxu0 0.0
        %983 = vmatpush1.msra.mxu0 0.0
        %984 = vmatprep.subr.mxu0 0.0
        %985 = vmatpush1.msra.mxu0 0.0
        %986 = vmatprep.subr.mxu0 0.0
        %987 = vmatpush1.msra.mxu0 0.0
        %988 = vmatprep.subr.mxu0 0.0
        %989 = vmatpush1.msra.mxu0 0.0
        %990 = vmatprep.subr.mxu0 0.0
        %991 = vmatpush1.msra.mxu0 0.0
        %992 = vmatprep.subr.mxu0 0.0
        %993 = vmatpush1.msra.mxu0 0.0
        %994 = vmatprep.subr.mxu0 0.0
        %995 = vmatpush1.msra.mxu0 0.0
        %996 = vmatprep.subr.mxu0 0.0
        %997 = vmatpush1.msra.mxu0 0.0
        %998 = vmatprep.subr.mxu0 0.0
        %999 = vmatpush1.msra.mxu0 0.0
        %1000 = vmatprep.subr.mxu0 0.0
        %1001 = vmatpush1.msra.mxu0 0.0
        %1002 = vmatprep.subr.mxu0 0.0
        %1003 = vmatpush1.msra.mxu0 0.0
        %1004 = vmatprep.subr.mxu0 0.0
        %1005 = vmatpush1.msra.mxu0 0.0
        %1006 = vmatprep.subr.mxu0 0.0
        %1007 = vmatpush1.msra.mxu0 0.0
        %1008 = vmatprep.subr.mxu0 0.0
        %1009 = vmatpush1.msra.mxu0 0.0
        %1010 = vmatprep.subr.mxu0 0.0
        %1011 = vmatpush1.msra.mxu0 0.0
        %1012 = vmatprep.subr.mxu0 0.0
        %1013 = vmatpush1.msra.mxu0 0.0
        %1014 = vmatprep.subr.mxu0 0.0
        %1015 = vmatpush1.msra.mxu0 0.0
        %1016 = vmatprep.subr.mxu0 0.0
        %1017 = vmatpush1.msra.mxu0 0.0
        %1018 = vmatprep.mubr.f32.mxu0 0.0
        %v1019 = vand.u32 %v852, 4294901760
        %1020 = vmatmul.mubr.f32.gmra.mrb[0].mxu0 %v1019
        %v1021 = vpop.f32.mrb[0].mxu0
        %v1022 = vadd.f32 %v931, %v1021
        %v1023 = vpop.f32.mrb[0].mxu0
        %1024 = vmatprep.mubr.f32.mxu0 0.0
        %v1025 = vand.u32 %v855, 4294901760
        %1026 = vmatmul.mubr.f32.gmra.mrb[0].mxu0 %v1025
        %v1027 = vpop.f32.mrb[0].mxu0
        %v1028 = vadd.f32 %v941, %v1027
        %v1029 = vpop.f32.mrb[0].mxu0
        %1030 = vdwg.mxu0
        %1031 = vmatprep.subr.mxu0 0.0
        %v1032 = vand.u32 %v326, 4294901760
        %v1033 = vsub.f32 %v326, %v1032
        %1034 = vmatpush1.msra.mxu0 %v1033
        %1035 = vmatprep.subr.mxu0 0.0
        %v1036 = vand.u32 %v327, 4294901760
        %v1037 = vsub.f32 %v327, %v1036
        %1038 = vmatpush1.msra.mxu0 %v1037
        %1039 = vmatprep.subr.mxu0 0.0
        %1040 = vmatpush1.msra.mxu0 0.0
        %1041 = vmatprep.subr.mxu0 0.0
        %1042 = vmatpush1.msra.mxu0 0.0
        %1043 = vmatprep.subr.mxu0 0.0
        %1044 = vmatpush1.msra.mxu0 0.0
        %1045 = vmatprep.subr.mxu0 0.0
        %1046 = vmatpush1.msra.mxu0 0.0
        %1047 = vmatprep.subr.mxu0 0.0
        %1048 = vmatpush1.msra.mxu0 0.0
        %1049 = vmatprep.subr.mxu0 0.0
        %1050 = vmatpush1.msra.mxu0 0.0
        %1051 = vmatprep.subr.mxu0 0.0
        %1052 = vmatpush1.msra.mxu0 0.0
        %1053 = vmatprep.subr.mxu0 0.0
        %1054 = vmatpush1.msra.mxu0 0.0
        %1055 = vmatprep.subr.mxu0 0.0
        %1056 = vmatpush1.msra.mxu0 0.0
        %1057 = vmatprep.subr.mxu0 0.0
        %1058 = vmatpush1.msra.mxu0 0.0
        %1059 = vmatprep.subr.mxu0 0.0
        %1060 = vmatpush1.msra.mxu0 0.0
        %1061 = vmatprep.subr.mxu0 0.0
        %1062 = vmatpush1.msra.mxu0 0.0
        %1063 = vmatprep.subr.mxu0 0.0
        %1064 = vmatpush1.msra.mxu0 0.0
        %1065 = vmatprep.subr.mxu0 0.0
        %1066 = vmatpush1.msra.mxu0 0.0
        %1067 = vmatprep.subr.mxu0 0.0
        %1068 = vmatpush1.msra.mxu0 0.0
        %1069 = vmatprep.subr.mxu0 0.0
        %1070 = vmatpush1.msra.mxu0 0.0
        %1071 = vmatprep.subr.mxu0 0.0
        %1072 = vmatpush1.msra.mxu0 0.0
        %1073 = vmatprep.subr.mxu0 0.0
        %1074 = vmatpush1.msra.mxu0 0.0
        %1075 = vmatprep.subr.mxu0 0.0
        %1076 = vmatpush1.msra.mxu0 0.0
        %1077 = vmatprep.subr.mxu0 0.0
        %1078 = vmatpush1.msra.mxu0 0.0
        %1079 = vmatprep.subr.mxu0 0.0
        %1080 = vmatpush1.msra.mxu0 0.0
        %1081 = vmatprep.subr.mxu0 0.0
        %1082 = vmatpush1.msra.mxu0 0.0
        %1083 = vmatprep.subr.mxu0 0.0
        %1084 = vmatpush1.msra.mxu0 0.0
        %1085 = vmatprep.subr.mxu0 0.0
        %1086 = vmatpush1.msra.mxu0 0.0
        %1087 = vmatprep.subr.mxu0 0.0
        %1088 = vmatpush1.msra.mxu0 0.0
        %1089 = vmatprep.subr.mxu0 0.0
        %1090 = vmatpush1.msra.mxu0 0.0
        %1091 = vmatprep.subr.mxu0 0.0
        %1092 = vmatpush1.msra.mxu0 0.0
        %1093 = vmatprep.subr.mxu0 0.0
        %1094 = vmatpush1.msra.mxu0 0.0
        %1095 = vmatprep.subr.mxu0 0.0
        %1096 = vmatpush1.msra.mxu0 0.0
        %1097 = vmatprep.subr.mxu0 0.0
        %1098 = vmatpush1.msra.mxu0 0.0
        %1099 = vmatprep.mubr.f32.mxu0 0.0
        %v1100 = vand.u32 %v852, 4294901760
        %v1101 = vsub.f32 %v852, %v1100
        %1102 = vmatmul.mubr.f32.gmra.mrb[0].mxu0 %v1101
        %v1103 = vpop.f32.mrb[0].mxu0
        %v1104 = vadd.f32 %v1022, %v1103
        %v1105 = vpop.f32.mrb[0].mxu0
        %1106 = vmatprep.mubr.f32.mxu0 0.0
        %v1107 = vand.u32 %v855, 4294901760
        %v1108 = vsub.f32 %v855, %v1107
        %1109 = vmatmul.mubr.f32.gmra.mrb[0].mxu0 %v1108
        %v1110 = vpop.f32.mrb[0].mxu0
        %v1111 = vadd.f32 %v1028, %v1110
        %v1112 = vpop.f32.mrb[0].mxu0
        %1113 = vdwg.mxu0
        %1114 = vmatprep.subr.mxu0 0.0
        %v1115 = vand.u32 %v326, 4294901760
        %1116 = vmatpush1.msra.mxu0 %v1115
        %1117 = vmatprep.subr.mxu0 0.0
        %v1118 = vand.u32 %v327, 4294901760
        %1119 = vmatpush1.msra.mxu0 %v1118
        %1120 = vmatprep.subr.mxu0 0.0
        %1121 = vmatpush1.msra.mxu0 0.0
        %1122 = vmatprep.subr.mxu0 0.0
        %1123 = vmatpush1.msra.mxu0 0.0
        %1124 = vmatprep.subr.mxu0 0.0
        %1125 = vmatpush1.msra.mxu0 0.0
        %1126 = vmatprep.subr.mxu0 0.0
        %1127 = vmatpush1.msra.mxu0 0.0
        %1128 = vmatprep.subr.mxu0 0.0
        %1129 = vmatpush1.msra.mxu0 0.0
        %1130 = vmatprep.subr.mxu0 0.0
        %1131 = vmatpush1.msra.mxu0 0.0
        %1132 = vmatprep.subr.mxu0 0.0
        %1133 = vmatpush1.msra.mxu0 0.0
        %1134 = vmatprep.subr.mxu0 0.0
        %1135 = vmatpush1.msra.mxu0 0.0
        %1136 = vmatprep.subr.mxu0 0.0
        %1137 = vmatpush1.msra.mxu0 0.0
        %1138 = vmatprep.subr.mxu0 0.0
        %1139 = vmatpush1.msra.mxu0 0.0
        %1140 = vmatprep.subr.mxu0 0.0
        %1141 = vmatpush1.msra.mxu0 0.0
        %1142 = vmatprep.subr.mxu0 0.0
        %1143 = vmatpush1.msra.mxu0 0.0
        %1144 = vmatprep.subr.mxu0 0.0
        %1145 = vmatpush1.msra.mxu0 0.0
        %1146 = vmatprep.subr.mxu0 0.0
        %1147 = vmatpush1.msra.mxu0 0.0
        %1148 = vmatprep.subr.mxu0 0.0
        %1149 = vmatpush1.msra.mxu0 0.0
        %1150 = vmatprep.subr.mxu0 0.0
        %1151 = vmatpush1.msra.mxu0 0.0
        %1152 = vmatprep.subr.mxu0 0.0
        %1153 = vmatpush1.msra.mxu0 0.0
        %1154 = vmatprep.subr.mxu0 0.0
        %1155 = vmatpush1.msra.mxu0 0.0
        %1156 = vmatprep.subr.mxu0 0.0
        %1157 = vmatpush1.msra.mxu0 0.0
        %1158 = vmatprep.subr.mxu0 0.0
        %1159 = vmatpush1.msra.mxu0 0.0
        %1160 = vmatprep.subr.mxu0 0.0
        %1161 = vmatpush1.msra.mxu0 0.0
        %1162 = vmatprep.subr.mxu0 0.0
        %1163 = vmatpush1.msra.mxu0 0.0
        %1164 = vmatprep.subr.mxu0 0.0
        %1165 = vmatpush1.msra.mxu0 0.0
        %1166 = vmatprep.subr.mxu0 0.0
        %1167 = vmatpush1.msra.mxu0 0.0
        %1168 = vmatprep.subr.mxu0 0.0
        %1169 = vmatpush1.msra.mxu0 0.0
        %1170 = vmatprep.subr.mxu0 0.0
        %1171 = vmatpush1.msra.mxu0 0.0
        %1172 = vmatprep.subr.mxu0 0.0
        %1173 = vmatpush1.msra.mxu0 0.0
        %1174 = vmatprep.subr.mxu0 0.0
        %1175 = vmatpush1.msra.mxu0 0.0
        %1176 = vmatprep.subr.mxu0 0.0
        %1177 = vmatpush1.msra.mxu0 0.0
        %1178 = vmatprep.subr.mxu0 0.0
        %1179 = vmatpush1.msra.mxu0 0.0
        %1180 = vmatprep.mubr.f32.mxu0 0.0
        %v1181 = vand.u32 %v852, 4294901760
        %v1182 = vsub.f32 %v852, %v1181
        %v1183 = vand.u32 %v1182, 4294901760
        %1184 = vmatmul.mubr.f32.gmra.mrb[0].mxu0 %v1183
        %v1185 = vpop.f32.mrb[0].mxu0
        %v1186 = vadd.f32 %v1104, %v1185
        %v1187 = vpop.f32.mrb[0].mxu0
        %1188 = vmatprep.mubr.f32.mxu0 0.0
        %v1189 = vand.u32 %v855, 4294901760
        %v1190 = vsub.f32 %v855, %v1189
        %v1191 = vand.u32 %v1190, 4294901760
        %1192 = vmatmul.mubr.f32.gmra.mrb[0].mxu0 %v1191
        %v1193 = vpop.f32.mrb[0].mxu0
        %v1194 = vadd.f32 %v1111, %v1193
        %v1195 = vpop.f32.mrb[0].mxu0
        %1196 = vdwg.mxu0
        %1197 = vmatprep.subr.mxu0 0.0
        %v1198 = vand.u32 %v326, 4294901760
        %v1199 = vsub.f32 %v326, %v1198
        %v1200 = vand.u32 %v1199, 4294901760
        %1201 = vmatpush1.msra.mxu0 %v1200
        %1202 = vmatprep.subr.mxu0 0.0
        %v1203 = vand.u32 %v327, 4294901760
        %v1204 = vsub.f32 %v327, %v1203
        %v1205 = vand.u32 %v1204, 4294901760
        %1206 = vmatpush1.msra.mxu0 %v1205
        %1207 = vmatprep.subr.mxu0 0.0
        %1208 = vmatpush1.msra.mxu0 0.0
        %1209 = vmatprep.subr.mxu0 0.0
        %1210 = vmatpush1.msra.mxu0 0.0
        %1211 = vmatprep.subr.mxu0 0.0
        %1212 = vmatpush1.msra.mxu0 0.0
        %1213 = vmatprep.subr.mxu0 0.0
        %1214 = vmatpush1.msra.mxu0 0.0
        %1215 = vmatprep.subr.mxu0 0.0
        %1216 = vmatpush1.msra.mxu0 0.0
        %1217 = vmatprep.subr.mxu0 0.0
        %1218 = vmatpush1.msra.mxu0 0.0
        %1219 = vmatprep.subr.mxu0 0.0
        %1220 = vmatpush1.msra.mxu0 0.0
        %1221 = vmatprep.subr.mxu0 0.0
        %1222 = vmatpush1.msra.mxu0 0.0
        %1223 = vmatprep.subr.mxu0 0.0
        %1224 = vmatpush1.msra.mxu0 0.0
        %1225 = vmatprep.subr.mxu0 0.0
        %1226 = vmatpush1.msra.mxu0 0.0
        %1227 = vmatprep.subr.mxu0 0.0
        %1228 = vmatpush1.msra.mxu0 0.0
        %1229 = vmatprep.subr.mxu0 0.0
        %1230 = vmatpush1.msra.mxu0 0.0
        %1231 = vmatprep.subr.mxu0 0.0
        %1232 = vmatpush1.msra.mxu0 0.0
        %1233 = vmatprep.subr.mxu0 0.0
        %1234 = vmatpush1.msra.mxu0 0.0
        %1235 = vmatprep.subr.mxu0 0.0
        %1236 = vmatpush1.msra.mxu0 0.0
        %1237 = vmatprep.subr.mxu0 0.0
        %1238 = vmatpush1.msra.mxu0 0.0
        %1239 = vmatprep.subr.mxu0 0.0
        %1240 = vmatpush1.msra.mxu0 0.0
        %1241 = vmatprep.subr.mxu0 0.0
        %1242 = vmatpush1.msra.mxu0 0.0
        %1243 = vmatprep.subr.mxu0 0.0
        %1244 = vmatpush1.msra.mxu0 0.0
        %1245 = vmatprep.subr.mxu0 0.0
        %1246 = vmatpush1.msra.mxu0 0.0
        %1247 = vmatprep.subr.mxu0 0.0
        %1248 = vmatpush1.msra.mxu0 0.0
        %1249 = vmatprep.subr.mxu0 0.0
        %1250 = vmatpush1.msra.mxu0 0.0
        %1251 = vmatprep.subr.mxu0 0.0
        %1252 = vmatpush1.msra.mxu0 0.0
        %1253 = vmatprep.subr.mxu0 0.0
        %1254 = vmatpush1.msra.mxu0 0.0
        %1255 = vmatprep.subr.mxu0 0.0
        %1256 = vmatpush1.msra.mxu0 0.0
        %1257 = vmatprep.subr.mxu0 0.0
        %1258 = vmatpush1.msra.mxu0 0.0
        %1259 = vmatprep.subr.mxu0 0.0
        %1260 = vmatpush1.msra.mxu0 0.0
        %1261 = vmatprep.subr.mxu0 0.0
        %1262 = vmatpush1.msra.mxu0 0.0
        %1263 = vmatprep.subr.mxu0 0.0
        %1264 = vmatpush1.msra.mxu0 0.0
        %1265 = vmatprep.subr.mxu0 0.0
        %1266 = vmatpush1.msra.mxu0 0.0
        %1267 = vmatprep.mubr.f32.mxu0 0.0
        %v1268 = vand.u32 %v852, 4294901760
        %1269 = vmatmul.mubr.f32.gmra.mrb[0].mxu0 %v1268
        %v1270 = vpop.f32.mrb[0].mxu0
        %v1271 = vadd.f32 %v1186, %v1270
        %v1272 = vpop.f32.mrb[0].mxu0
        %1273 = vmatprep.mubr.f32.mxu0 0.0
        %v1274 = vand.u32 %v855, 4294901760
        %1275 = vmatmul.mubr.f32.gmra.mrb[0].mxu0 %v1274
        %v1276 = vpop.f32.mrb[0].mxu0
        %v1277 = vadd.f32 %v1194, %v1276
        %v1278 = vpop.f32.mrb[0].mxu0
        %1279 = vdwg.mxu0
        %1280 = vmatprep.subr.mxu0 0.0
        %v1281 = vand.u32 %v326, 4294901760
        %1282 = vmatpush1.msra.mxu0 %v1281
        %1283 = vmatprep.subr.mxu0 0.0
        %v1284 = vand.u32 %v327, 4294901760
        %1285 = vmatpush1.msra.mxu0 %v1284
        %1286 = vmatprep.subr.mxu0 0.0
        %1287 = vmatpush1.msra.mxu0 0.0
        %1288 = vmatprep.subr.mxu0 0.0
        %1289 = vmatpush1.msra.mxu0 0.0
        %1290 = vmatprep.subr.mxu0 0.0
        %1291 = vmatpush1.msra.mxu0 0.0
        %1292 = vmatprep.subr.mxu0 0.0
        %1293 = vmatpush1.msra.mxu0 0.0
        %1294 = vmatprep.subr.mxu0 0.0
        %1295 = vmatpush1.msra.mxu0 0.0
        %1296 = vmatprep.subr.mxu0 0.0
        %1297 = vmatpush1.msra.mxu0 0.0
        %1298 = vmatprep.subr.mxu0 0.0
        %1299 = vmatpush1.msra.mxu0 0.0
        %1300 = vmatprep.subr.mxu0 0.0
        %1301 = vmatpush1.msra.mxu0 0.0
        %1302 = vmatprep.subr.mxu0 0.0
        %1303 = vmatpush1.msra.mxu0 0.0
        %1304 = vmatprep.subr.mxu0 0.0
        %1305 = vmatpush1.msra.mxu0 0.0
        %1306 = vmatprep.subr.mxu0 0.0
        %1307 = vmatpush1.msra.mxu0 0.0
        %1308 = vmatprep.subr.mxu0 0.0
        %1309 = vmatpush1.msra.mxu0 0.0
        %1310 = vmatprep.subr.mxu0 0.0
        %1311 = vmatpush1.msra.mxu0 0.0
        %1312 = vmatprep.subr.mxu0 0.0
        %1313 = vmatpush1.msra.mxu0 0.0
        %1314 = vmatprep.subr.mxu0 0.0
        %1315 = vmatpush1.msra.mxu0 0.0
        %1316 = vmatprep.subr.mxu0 0.0
        %1317 = vmatpush1.msra.mxu0 0.0
        %1318 = vmatprep.subr.mxu0 0.0
        %1319 = vmatpush1.msra.mxu0 0.0
        %1320 = vmatprep.subr.mxu0 0.0
        %1321 = vmatpush1.msra.mxu0 0.0
        %1322 = vmatprep.subr.mxu0 0.0
        %1323 = vmatpush1.msra.mxu0 0.0
        %1324 = vmatprep.subr.mxu0 0.0
        %1325 = vmatpush1.msra.mxu0 0.0
        %1326 = vmatprep.subr.mxu0 0.0
        %1327 = vmatpush1.msra.mxu0 0.0
        %1328 = vmatprep.subr.mxu0 0.0
        %1329 = vmatpush1.msra.mxu0 0.0
        %1330 = vmatprep.subr.mxu0 0.0
        %1331 = vmatpush1.msra.mxu0 0.0
        %1332 = vmatprep.subr.mxu0 0.0
        %1333 = vmatpush1.msra.mxu0 0.0
        %1334 = vmatprep.subr.mxu0 0.0
        %1335 = vmatpush1.msra.mxu0 0.0
        %1336 = vmatprep.subr.mxu0 0.0
        %1337 = vmatpush1.msra.mxu0 0.0
        %1338 = vmatprep.subr.mxu0 0.0
        %1339 = vmatpush1.msra.mxu0 0.0
        %1340 = vmatprep.subr.mxu0 0.0
        %1341 = vmatpush1.msra.mxu0 0.0
        %1342 = vmatprep.subr.mxu0 0.0
        %1343 = vmatpush1.msra.mxu0 0.0
        %1344 = vmatprep.subr.mxu0 0.0
        %1345 = vmatpush1.msra.mxu0 0.0
        %1346 = vmatprep.mubr.f32.mxu0 0.0
        %v1347 = vand.u32 %v852, 4294901760
        %1348 = vmatmul.mubr.f32.gmra.mrb[0].mxu0 %v1347
        %v1349 = vpop.f32.mrb[0].mxu0
        %v1350 = vadd.f32 %v1271, %v1349
        %v1351 = vpop.f32.mrb[0].mxu0
        %1352 = vmatprep.mubr.f32.mxu0 0.0
        %v1353 = vand.u32 %v855, 4294901760
        %1354 = vmatmul.mubr.f32.gmra.mrb[0].mxu0 %v1353
        %v1355 = vpop.f32.mrb[0].mxu0
        %v1356 = vadd.f32 %v1277, %v1355
        %v1357 = vpop.f32.mrb[0].mxu0
        %1358 = vdwg.mxu0
        %v1359 = vmul.f32 %v1350, %v314
        %v1360 = vmul.f32 %v1356, %v315
        %v1361 = vadd.f32 %v1359, %v1360
        %v1362 = vrot.slane %v1361, 4
        %v1363 = vadd.f32 %v1361, %v1362
        %v1364 = vrot.slane %v1363, 2
        %v1365 = vadd.f32 %v1363, %v1364
        %v1366 = vrot.slane %v1365, 1
        %v1367 = vadd.f32 %v1365, %v1366
        %v1368 = vsub.f32 0.0, %v847
        %v1369 = vsub.f32 0.0, %v1367
        %v1370 = vadd.f32 %v289, %v1368
        %v1371 = vmul.f32 %v1370, 1.0666667
        %v1372 = vsub.f32 %v1371, 0.5
        %v1373 = vadd.f32 %v291, %v1369
        %v1374 = vmul.f32 %v1373, 1.0666667
        %v1375 = vsub.f32 %v1374, 0.5
        %v1376 = vsub.f32 %v1372, %v302
        %v1377 = vsub.f32 %v1372, %v303
        %v1378 = vand.u32 2147483647, %v1376
        %v1379 = vand.u32 2147483647, %v1377
        %v1380 = vsub.f32 1.0, %v1378
        %v1381 = vsub.f32 1.0, %v1379
        %v1382 = vmax.f32 %v1380, 0.0
        %v1383 = vmax.f32 %v1381, 0.0
        %v1384 = vsub.f32 %v1375, %v302
        %v1385 = vsub.f32 %v1375, %v303
        %v1386 = vand.u32 2147483647, %v1384
        %v1387 = vand.u32 2147483647, %v1385
        %v1388 = vsub.f32 1.0, %v1386
        %v1389 = vsub.f32 1.0, %v1387
        %v1390 = vmax.f32 %v1388, 0.0
        %v1391 = vmax.f32 %v1389, 0.0
        %v1392 = vld [vmem:[%s248] sm:$0xff]
        %v1393 = vld [vmem:[%s248 + $0x8] sm:$0xff]
        %v1395 = vsel %vm330, %v1392, 0
        %v1398 = vsel %vm330, %v1393, 0
        %1400 = vmatprep.subr.mxu0 0.0
        %1401 = vmatpush1.msra.mxu0 %v1390
        %1402 = vmatprep.subr.mxu0 0.0
        %1403 = vmatpush1.msra.mxu0 %v1391
        %1404 = vmatprep.subr.mxu0 0.0
        %1405 = vmatpush1.msra.mxu0 0.0
        %1406 = vmatprep.subr.mxu0 0.0
        %1407 = vmatpush1.msra.mxu0 0.0
        %1408 = vmatprep.subr.mxu0 0.0
        %1409 = vmatpush1.msra.mxu0 0.0
        %1410 = vmatprep.subr.mxu0 0.0
        %1411 = vmatpush1.msra.mxu0 0.0
        %1412 = vmatprep.subr.mxu0 0.0
        %1413 = vmatpush1.msra.mxu0 0.0
        %1414 = vmatprep.subr.mxu0 0.0
        %1415 = vmatpush1.msra.mxu0 0.0
        %1416 = vmatprep.subr.mxu0 0.0
        %1417 = vmatpush1.msra.mxu0 0.0
        %1418 = vmatprep.subr.mxu0 0.0
        %1419 = vmatpush1.msra.mxu0 0.0
        %1420 = vmatprep.subr.mxu0 0.0
        %1421 = vmatpush1.msra.mxu0 0.0
        %1422 = vmatprep.subr.mxu0 0.0
        %1423 = vmatpush1.msra.mxu0 0.0
        %1424 = vmatprep.subr.mxu0 0.0
        %1425 = vmatpush1.msra.mxu0 0.0
        %1426 = vmatprep.subr.mxu0 0.0
        %1427 = vmatpush1.msra.mxu0 0.0
        %1428 = vmatprep.subr.mxu0 0.0
        %1429 = vmatpush1.msra.mxu0 0.0
        %1430 = vmatprep.subr.mxu0 0.0
        %1431 = vmatpush1.msra.mxu0 0.0
        %1432 = vmatprep.subr.mxu0 0.0
        %1433 = vmatpush1.msra.mxu0 0.0
        %1434 = vmatprep.subr.mxu0 0.0
        %1435 = vmatpush1.msra.mxu0 0.0
        %1436 = vmatprep.subr.mxu0 0.0
        %1437 = vmatpush1.msra.mxu0 0.0
        %1438 = vmatprep.subr.mxu0 0.0
        %1439 = vmatpush1.msra.mxu0 0.0
        %1440 = vmatprep.subr.mxu0 0.0
        %1441 = vmatpush1.msra.mxu0 0.0
        %1442 = vmatprep.subr.mxu0 0.0
        %1443 = vmatpush1.msra.mxu0 0.0
        %1444 = vmatprep.subr.mxu0 0.0
        %1445 = vmatpush1.msra.mxu0 0.0
        %1446 = vmatprep.subr.mxu0 0.0
        %1447 = vmatpush1.msra.mxu0 0.0
        %1448 = vmatprep.subr.mxu0 0.0
        %1449 = vmatpush1.msra.mxu0 0.0
        %1450 = vmatprep.subr.mxu0 0.0
        %1451 = vmatpush1.msra.mxu0 0.0
        %1452 = vmatprep.subr.mxu0 0.0
        %1453 = vmatpush1.msra.mxu0 0.0
        %1454 = vmatprep.subr.mxu0 0.0
        %1455 = vmatpush1.msra.mxu0 0.0
        %1456 = vmatprep.subr.mxu0 0.0
        %1457 = vmatpush1.msra.mxu0 0.0
        %1458 = vmatprep.subr.mxu0 0.0
        %1459 = vmatpush1.msra.mxu0 0.0
        %1460 = vmatprep.subr.mxu0 0.0
        %1461 = vmatpush1.msra.mxu0 0.0
        %1462 = vmatprep.subr.mxu0 0.0
        %1463 = vmatpush1.msra.mxu0 0.0
        %1464 = vmatprep.mubr.f32.mxu0 0.0
        %1465 = vmatmul.mubr.f32.gmra.mrb[0].mxu0 %v1395
        %v1466 = vpop.f32.mrb[0].mxu0
        %v1467 = vadd.f32 0.0, %v1466
        %v1468 = vpop.f32.mrb[0].mxu0
        %1469 = vmatprep.mubr.f32.mxu0 0.0
        %1470 = vmatmul.mubr.f32.gmra.mrb[0].mxu0 %v1398
        %v1471 = vpop.f32.mrb[0].mxu0
        %v1472 = vadd.f32 0.0, %v1471
        %v1473 = vpop.f32.mrb[0].mxu0
        %1474 = vdwg.mxu0
        %v1475 = vmul.f32 %v1467, %v1382
        %v1476 = vmul.f32 %v1472, %v1383
        %v1477 = vadd.f32 %v1475, %v1476
        %v1478 = vrot.slane %v1477, 4
        %v1479 = vadd.f32 %v1477, %v1478
        %v1480 = vrot.slane %v1479, 2
        %v1481 = vadd.f32 %v1479, %v1480
        %v1482 = vrot.slane %v1481, 1
        %v1483 = vadd.f32 %v1481, %v1482
        %s1484 = scalar_lea.vmem %s248, 16 [#allocation7]
        %v1485 = vld [vmem:[%s1484] sm:$0xff]
        %v1486 = vld [vmem:[%s1484 + $0x8] sm:$0xff]
        %v1488 = vsel %vm330, %v1485, 0
        %v1491 = vsel %vm330, %v1486, 0
        %1493 = vmatprep.subr.mxu0 0.0
        %1494 = vmatpush1.msra.mxu0 %v1390
        %1495 = vmatprep.subr.mxu0 0.0
        %1496 = vmatpush1.msra.mxu0 %v1391
        %1497 = vmatprep.subr.mxu0 0.0
        %1498 = vmatpush1.msra.mxu0 0.0
        %1499 = vmatprep.subr.mxu0 0.0
        %1500 = vmatpush1.msra.mxu0 0.0
        %1501 = vmatprep.subr.mxu0 0.0
        %1502 = vmatpush1.msra.mxu0 0.0
        %1503 = vmatprep.subr.mxu0 0.0
        %1504 = vmatpush1.msra.mxu0 0.0
        %1505 = vmatprep.subr.mxu0 0.0
        %1506 = vmatpush1.msra.mxu0 0.0
        %1507 = vmatprep.subr.mxu0 0.0
        %1508 = vmatpush1.msra.mxu0 0.0
        %1509 = vmatprep.subr.mxu0 0.0
        %1510 = vmatpush1.msra.mxu0 0.0
        %1511 = vmatprep.subr.mxu0 0.0
        %1512 = vmatpush1.msra.mxu0 0.0
        %1513 = vmatprep.subr.mxu0 0.0
        %1514 = vmatpush1.msra.mxu0 0.0
        %1515 = vmatprep.subr.mxu0 0.0
        %1516 = vmatpush1.msra.mxu0 0.0
        %1517 = vmatprep.subr.mxu0 0.0
        %1518 = vmatpush1.msra.mxu0 0.0
        %1519 = vmatprep.subr.mxu0 0.0
        %1520 = vmatpush1.msra.mxu0 0.0
        %1521 = vmatprep.subr.mxu0 0.0
        %1522 = vmatpush1.msra.mxu0 0.0
        %1523 = vmatprep.subr.mxu0 0.0
        %1524 = vmatpush1.msra.mxu0 0.0
        %1525 = vmatprep.subr.mxu0 0.0
        %1526 = vmatpush1.msra.mxu0 0.0
        %1527 = vmatprep.subr.mxu0 0.0
        %1528 = vmatpush1.msra.mxu0 0.0
        %1529 = vmatprep.subr.mxu0 0.0
        %1530 = vmatpush1.msra.mxu0 0.0
        %1531 = vmatprep.subr.mxu0 0.0
        %1532 = vmatpush1.msra.mxu0 0.0
        %1533 = vmatprep.subr.mxu0 0.0
        %1534 = vmatpush1.msra.mxu0 0.0
        %1535 = vmatprep.subr.mxu0 0.0
        %1536 = vmatpush1.msra.mxu0 0.0
        %1537 = vmatprep.subr.mxu0 0.0
        %1538 = vmatpush1.msra.mxu0 0.0
        %1539 = vmatprep.subr.mxu0 0.0
        %1540 = vmatpush1.msra.mxu0 0.0
        %1541 = vmatprep.subr.mxu0 0.0
        %1542 = vmatpush1.msra.mxu0 0.0
        %1543 = vmatprep.subr.mxu0 0.0
        %1544 = vmatpush1.msra.mxu0 0.0
        %1545 = vmatprep.subr.mxu0 0.0
        %1546 = vmatpush1.msra.mxu0 0.0
        %1547 = vmatprep.subr.mxu0 0.0
        %1548 = vmatpush1.msra.mxu0 0.0
        %1549 = vmatprep.subr.mxu0 0.0
        %1550 = vmatpush1.msra.mxu0 0.0
        %1551 = vmatprep.subr.mxu0 0.0
        %1552 = vmatpush1.msra.mxu0 0.0
        %1553 = vmatprep.subr.mxu0 0.0
        %1554 = vmatpush1.msra.mxu0 0.0
        %1555 = vmatprep.subr.mxu0 0.0
        %1556 = vmatpush1.msra.mxu0 0.0
        %1557 = vmatprep.mubr.f32.mxu0 0.0
        %1558 = vmatmul.mubr.f32.gmra.mrb[0].mxu0 %v1488
        %v1559 = vpop.f32.mrb[0].mxu0
        %v1560 = vadd.f32 0.0, %v1559
        %v1561 = vpop.f32.mrb[0].mxu0
        %1562 = vmatprep.mubr.f32.mxu0 0.0
        %1563 = vmatmul.mubr.f32.gmra.mrb[0].mxu0 %v1491
        %v1564 = vpop.f32.mrb[0].mxu0
        %v1565 = vadd.f32 0.0, %v1564
        %v1566 = vpop.f32.mrb[0].mxu0
        %1567 = vdwg.mxu0
        %v1568 = vmul.f32 %v1560, %v1382
        %v1569 = vmul.f32 %v1565, %v1383
        %v1570 = vadd.f32 %v1568, %v1569
        %v1571 = vrot.slane %v1570, 4
        %v1572 = vadd.f32 %v1570, %v1571
        %v1573 = vrot.slane %v1572, 2
        %v1574 = vadd.f32 %v1572, %v1573
        %v1575 = vrot.slane %v1574, 1
        %v1576 = vadd.f32 %v1574, %v1575
        %s1577 = scalar_lea.vmem %s248, 32 [#allocation7]
        %v1578 = vld [vmem:[%s1577] sm:$0xff]
        %v1579 = vld [vmem:[%s1577 + $0x8] sm:$0xff]
        %v1581 = vsel %vm330, %v1578, 0
        %v1584 = vsel %vm330, %v1579, 0
        %1586 = vmatprep.subr.mxu0 0.0
        %1587 = vmatpush1.msra.mxu0 %v1390
        %1588 = vmatprep.subr.mxu0 0.0
        %1589 = vmatpush1.msra.mxu0 %v1391
        %1590 = vmatprep.subr.mxu0 0.0
        %1591 = vmatpush1.msra.mxu0 0.0
        %1592 = vmatprep.subr.mxu0 0.0
        %1593 = vmatpush1.msra.mxu0 0.0
        %1594 = vmatprep.subr.mxu0 0.0
        %1595 = vmatpush1.msra.mxu0 0.0
        %1596 = vmatprep.subr.mxu0 0.0
        %1597 = vmatpush1.msra.mxu0 0.0
        %1598 = vmatprep.subr.mxu0 0.0
        %1599 = vmatpush1.msra.mxu0 0.0
        %1600 = vmatprep.subr.mxu0 0.0
        %1601 = vmatpush1.msra.mxu0 0.0
        %1602 = vmatprep.subr.mxu0 0.0
        %1603 = vmatpush1.msra.mxu0 0.0
        %1604 = vmatprep.subr.mxu0 0.0
        %1605 = vmatpush1.msra.mxu0 0.0
        %1606 = vmatprep.subr.mxu0 0.0
        %1607 = vmatpush1.msra.mxu0 0.0
        %1608 = vmatprep.subr.mxu0 0.0
        %1609 = vmatpush1.msra.mxu0 0.0
        %1610 = vmatprep.subr.mxu0 0.0
        %1611 = vmatpush1.msra.mxu0 0.0
        %1612 = vmatprep.subr.mxu0 0.0
        %1613 = vmatpush1.msra.mxu0 0.0
        %1614 = vmatprep.subr.mxu0 0.0
        %1615 = vmatpush1.msra.mxu0 0.0
        %1616 = vmatprep.subr.mxu0 0.0
        %1617 = vmatpush1.msra.mxu0 0.0
        %1618 = vmatprep.subr.mxu0 0.0
        %1619 = vmatpush1.msra.mxu0 0.0
        %1620 = vmatprep.subr.mxu0 0.0
        %1621 = vmatpush1.msra.mxu0 0.0
        %1622 = vmatprep.subr.mxu0 0.0
        %1623 = vmatpush1.msra.mxu0 0.0
        %1624 = vmatprep.subr.mxu0 0.0
        %1625 = vmatpush1.msra.mxu0 0.0
        %1626 = vmatprep.subr.mxu0 0.0
        %1627 = vmatpush1.msra.mxu0 0.0
        %1628 = vmatprep.subr.mxu0 0.0
        %1629 = vmatpush1.msra.mxu0 0.0
        %1630 = vmatprep.subr.mxu0 0.0
        %1631 = vmatpush1.msra.mxu0 0.0
        %1632 = vmatprep.subr.mxu0 0.0
        %1633 = vmatpush1.msra.mxu0 0.0
        %1634 = vmatprep.subr.mxu0 0.0
        %1635 = vmatpush1.msra.mxu0 0.0
        %1636 = vmatprep.subr.mxu0 0.0
        %1637 = vmatpush1.msra.mxu0 0.0
        %1638 = vmatprep.subr.mxu0 0.0
        %1639 = vmatpush1.msra.mxu0 0.0
        %1640 = vmatprep.subr.mxu0 0.0
        %1641 = vmatpush1.msra.mxu0 0.0
        %1642 = vmatprep.subr.mxu0 0.0
        %1643 = vmatpush1.msra.mxu0 0.0
        %1644 = vmatprep.subr.mxu0 0.0
        %1645 = vmatpush1.msra.mxu0 0.0
        %1646 = vmatprep.subr.mxu0 0.0
        %1647 = vmatpush1.msra.mxu0 0.0
        %1648 = vmatprep.subr.mxu0 0.0
        %1649 = vmatpush1.msra.mxu0 0.0
        %1650 = vmatprep.mubr.f32.mxu0 0.0
        %1651 = vmatmul.mubr.f32.gmra.mrb[0].mxu0 %v1581
        %v1652 = vpop.f32.mrb[0].mxu0
        %v1653 = vadd.f32 0.0, %v1652
        %v1654 = vpop.f32.mrb[0].mxu0
        %1655 = vmatprep.mubr.f32.mxu0 0.0
        %1656 = vmatmul.mubr.f32.gmra.mrb[0].mxu0 %v1584
        %v1657 = vpop.f32.mrb[0].mxu0
        %v1658 = vadd.f32 0.0, %v1657
        %v1659 = vpop.f32.mrb[0].mxu0
        %1660 = vdwg.mxu0
        %v1661 = vmul.f32 %v1653, %v1382
        %v1662 = vmul.f32 %v1658, %v1383
        %v1663 = vadd.f32 %v1661, %v1662
        %v1664 = vrot.slane %v1663, 4
        %v1665 = vadd.f32 %v1663, %v1664
        %v1666 = vrot.slane %v1665, 2
        %v1667 = vadd.f32 %v1665, %v1666
        %v1668 = vrot.slane %v1667, 1
        %v1669 = vadd.f32 %v1667, %v1668
        %s1670 = scalar_lea.vmem %s248, 48 [#allocation7]
        %v1671 = vld [vmem:[%s1670] sm:$0xff]
        %v1672 = vld [vmem:[%s1670 + $0x8] sm:$0xff]
        %v1674 = vsel %vm330, %v1671, 0
        %v1677 = vsel %vm330, %v1672, 0
        %1679 = vmatprep.subr.mxu0 0.0
        %1680 = vmatpush1.msra.mxu0 %v1390
        %1681 = vmatprep.subr.mxu0 0.0
        %1682 = vmatpush1.msra.mxu0 %v1391
        %1683 = vmatprep.subr.mxu0 0.0
        %1684 = vmatpush1.msra.mxu0 0.0
        %1685 = vmatprep.subr.mxu0 0.0
        %1686 = vmatpush1.msra.mxu0 0.0
        %1687 = vmatprep.subr.mxu0 0.0
        %1688 = vmatpush1.msra.mxu0 0.0
        %1689 = vmatprep.subr.mxu0 0.0
        %1690 = vmatpush1.msra.mxu0 0.0
        %1691 = vmatprep.subr.mxu0 0.0
        %1692 = vmatpush1.msra.mxu0 0.0
        %1693 = vmatprep.subr.mxu0 0.0
        %1694 = vmatpush1.msra.mxu0 0.0
        %1695 = vmatprep.subr.mxu0 0.0
        %1696 = vmatpush1.msra.mxu0 0.0
        %1697 = vmatprep.subr.mxu0 0.0
        %1698 = vmatpush1.msra.mxu0 0.0
        %1699 = vmatprep.subr.mxu0 0.0
        %1700 = vmatpush1.msra.mxu0 0.0
        %1701 = vmatprep.subr.mxu0 0.0
        %1702 = vmatpush1.msra.mxu0 0.0
        %1703 = vmatprep.subr.mxu0 0.0
        %1704 = vmatpush1.msra.mxu0 0.0
        %1705 = vmatprep.subr.mxu0 0.0
        %1706 = vmatpush1.msra.mxu0 0.0
        %1707 = vmatprep.subr.mxu0 0.0
        %1708 = vmatpush1.msra.mxu0 0.0
        %1709 = vmatprep.subr.mxu0 0.0
        %1710 = vmatpush1.msra.mxu0 0.0
        %1711 = vmatprep.subr.mxu0 0.0
        %1712 = vmatpush1.msra.mxu0 0.0
        %1713 = vmatprep.subr.mxu0 0.0
        %1714 = vmatpush1.msra.mxu0 0.0
        %1715 = vmatprep.subr.mxu0 0.0
        %1716 = vmatpush1.msra.mxu0 0.0
        %1717 = vmatprep.subr.mxu0 0.0
        %1718 = vmatpush1.msra.mxu0 0.0
        %1719 = vmatprep.subr.mxu0 0.0
        %1720 = vmatpush1.msra.mxu0 0.0
        %1721 = vmatprep.subr.mxu0 0.0
        %1722 = vmatpush1.msra.mxu0 0.0
        %1723 = vmatprep.subr.mxu0 0.0
        %1724 = vmatpush1.msra.mxu0 0.0
        %1725 = vmatprep.subr.mxu0 0.0
        %1726 = vmatpush1.msra.mxu0 0.0
        %1727 = vmatprep.subr.mxu0 0.0
        %1728 = vmatpush1.msra.mxu0 0.0
        %1729 = vmatprep.subr.mxu0 0.0
        %1730 = vmatpush1.msra.mxu0 0.0
        %1731 = vmatprep.subr.mxu0 0.0
        %1732 = vmatpush1.msra.mxu0 0.0
        %1733 = vmatprep.subr.mxu0 0.0
        %1734 = vmatpush1.msra.mxu0 0.0
        %1735 = vmatprep.subr.mxu0 0.0
        %1736 = vmatpush1.msra.mxu0 0.0
        %1737 = vmatprep.subr.mxu0 0.0
        %1738 = vmatpush1.msra.mxu0 0.0
        %1739 = vmatprep.subr.mxu0 0.0
        %1740 = vmatpush1.msra.mxu0 0.0
        %1741 = vmatprep.subr.mxu0 0.0
        %1742 = vmatpush1.msra.mxu0 0.0
        %1743 = vmatprep.mubr.f32.mxu0 0.0
        %1744 = vmatmul.mubr.f32.gmra.mrb[0].mxu0 %v1674
        %v1745 = vpop.f32.mrb[0].mxu0
        %v1746 = vadd.f32 0.0, %v1745
        %v1747 = vpop.f32.mrb[0].mxu0
        %1748 = vmatprep.mubr.f32.mxu0 0.0
        %1749 = vmatmul.mubr.f32.gmra.mrb[0].mxu0 %v1677
        %v1750 = vpop.f32.mrb[0].mxu0
        %v1751 = vadd.f32 0.0, %v1750
        %v1752 = vpop.f32.mrb[0].mxu0
        %1753 = vdwg.mxu0
        %v1754 = vmul.f32 %v1746, %v1382
        %v1755 = vmul.f32 %v1751, %v1383
        %v1756 = vadd.f32 %v1754, %v1755
        %v1757 = vrot.slane %v1756, 4
        %v1758 = vadd.f32 %v1756, %v1757
        %v1759 = vrot.slane %v1758, 2
        %v1760 = vadd.f32 %v1758, %v1759
        %v1761 = vrot.slane %v1760, 1
        %v1762 = vadd.f32 %v1760, %v1761
        %vm1763 = vcmp.eq.s32.totalorder %v300, 1
        %v1764 = vsel %vm1763, %v1576, %v1483
        %vm1765 = vcmp.eq.s32.totalorder %v300, 2
        %v1766 = vsel %vm1765, %v1669, %v1764
        %vm1767 = vcmp.eq.s32.totalorder %v300, 3
        %v1768 = vsel %vm1767, %v1762, %v1766
        %1769 = vst [vmem:[%s280] sm:$0xf] %v1768
        %s1770 = sand.u32 %s125, 1
        %s1771 = scalar_lea.sflag [#allocation4], %s1770
        %s1772 = sand.u32 %s125, 1
        %s1773 = smul.addr %s1772, 4
        %s1774 = scalar_lea.vmem [#allocation8], %s1773
        // Predicated region
        $region45: #{tpu_custom_call.1} parent=31 // pred_check
          %p1775 = pneg %p135
        $region46: #{tpu_custom_call.1} parent=31 // pred_check_branch
          %1777 = sbr.rel (%p1775) target = $region48
        $region47: #{tpu_custom_call.1} parent=31 // pred_region
          %s1779 = ssub.s32 64, 64
          %1780 = vsyncadd %s1771, %s1779
          %s1781 = smul.addr %s27, 2
          %s1782 = sadd.s32 %s28, %s1781
          %s1783 = smul.addr %s1782, 64
          %s1784 = scalar_lea.hbm %s3, %s1783
          %s1786 = sshll.u32 %s1774, 4
          %s1787 = int_to_ptr.vmem [resolvable:$true] %s1786
          %1789 = dma.vmem_to_hbm [thread:$0]  %s1787, 64, %s1784, %s1771
        $region48: #{tpu_custom_call.1} parent=31 // pred_fallthru
          _
      $region32: #{tpu_custom_call.1} parent=5 // pred_fallthru
        _
      %p1790 = scmp.le.s32.totalorder 2, %s18
      // Predicated region
      $region49: #{tpu_custom_call.1} parent=5 // pred_check
        %p1791 = pneg %p1790
      $region50: #{tpu_custom_call.1} parent=5 // pred_check_branch
        %1793 = sbr.rel (%p1791) target = $region52
      $region51: #{tpu_custom_call.1} parent=5 // pred_region
        %s1794 = ssub.s32 %s18, 2
        // Predicated region
        $region53: #{tpu_custom_call.1} parent=51 // pred_check
          %p1795 = pneg %p141
        $region54: #{tpu_custom_call.1} parent=51 // pred_check_branch
          %1797 = sbr.rel (%p1795) target = $region56
        $region55: #{tpu_custom_call.1} parent=51 // pred_region
          %s1798 = sand.u32 %s126, 1
          %s1799 = scalar_lea.sflag [#allocation4], %s1798
          %s1800 = sand.u32 %s126, 1
          %s1801 = smul.addr %s1800, 4
          %s1802 = scalar_lea.vmem [#allocation8], %s1801
          %1803 = dma.done %s1799, 64
        $region56: #{tpu_custom_call.1} parent=51 // pred_fallthru
          _
      $region52: #{tpu_custom_call.1} parent=5 // pred_fallthru
        _
    $region6: #{tpu_custom_call.1} parent=1 // loop_footer
      %s22 = sadd.s32 1, %s18
    $region7: #{tpu_custom_call.1} parent=1 // loop_footer_branch
      %17 = sbr.rel target = $region3
    $region8: #{tpu_custom_call.1} parent=1 // loop_exit
      _
    %1804 = vsyncpa [#allocation3], 1
    %s1805 = scalar_lea.sflag [#allocation3], 1
    %1806 = vsyncpa %s1805, 1
    %1807 = vsyncpa [#allocation6], 1
    %s1808 = scalar_lea.sflag [#allocation6], 1
    %1809 = vsyncpa %s1808, 1
    %1810 = vsyncpa [#allocation4], 1
    %s1811 = scalar_lea.sflag [#allocation4], 1
    %1812 = vsyncpa %s1811, 1

</llo_original>
